<compile_context>
chip_gen: v7x
topology: tpu7x:2x2x1
jax: 0.10.0
libtpu: 0.0.40
codegen_flags: <defaults>
</compile_context>

<pallas_src>
import jax
import jax.numpy as jnp
from jax.experimental import pallas as pl
from jax.experimental.pallas import tpu as pltpu


# ---------------------------------------------------------------------------
# Pallas kernels
# ---------------------------------------------------------------------------
def _conv_pool_kernel(p_ref, w_ref, b_ref, o_ref):
    # p_ref: (4, K, nb) bf16 - patch matrices for the 4 positions of each 2x2 window
    # w_ref: (Cout, K)  bf16 - conv weights, feature order (kh, kw, cin)
    # b_ref: (Cout, 1)  f32  - conv bias
    # o_ref: (Cout, nb) bf16 - pooled conv output (lane-dense spatial*batch axis)
    w = w_ref[...]
    y0 = jnp.dot(w, p_ref[0], preferred_element_type=jnp.float32)
    y1 = jnp.dot(w, p_ref[1], preferred_element_type=jnp.float32)
    y2 = jnp.dot(w, p_ref[2], preferred_element_type=jnp.float32)
    y3 = jnp.dot(w, p_ref[3], preferred_element_type=jnp.float32)
    y = jnp.maximum(jnp.maximum(y0, y1), jnp.maximum(y2, y3))
    # bias after the max is valid because it is a per-channel constant
    o_ref[...] = (y + b_ref[...]).astype(o_ref.dtype)


def _fc_stack_kernel(x_ref, w1_ref, b1_ref, w2_ref, b2_ref, w3_ref, b3_ref,
                     o_ref):
    # Transposed orientation: x_ref (400, bm) bf16, out = W @ x, B on lanes.
    h = jnp.dot(w1_ref[...], x_ref[...],
                preferred_element_type=jnp.float32) + b1_ref[...]
    h = jnp.maximum(h, 0.0).astype(jnp.bfloat16)
    h = jnp.dot(w2_ref[...], h,
                preferred_element_type=jnp.float32) + b2_ref[...]
    h = jnp.maximum(h, 0.0).astype(jnp.bfloat16)
    o = jnp.dot(w3_ref[...], h,
                preferred_element_type=jnp.float32) + b3_ref[...]
    o_ref[...] = o.astype(o_ref.dtype)


# ---------------------------------------------------------------------------
# Pallas wrappers
# ---------------------------------------------------------------------------
def pallas_conv_pool(patches, wmat, bias, *, n_block=4096):
    """Fused (conv-as-GEMM + bias + 2x2 maxpool).

    patches: (4, K, Np) bf16 - K = k*k*Cin features, Np pooled positions,
             group m = 2*di + dj holds the patches of window position (di, dj).
    wmat:    (Cout, K);  bias: (Cout,)
    returns  (Cout, Np) bfloat16.
    """
    _, K, Np = patches.shape
    Cout = wmat.shape[0]
    b2 = bias.reshape(Cout, 1).astype(jnp.float32)
    nb = Np if Np <= n_block else n_block          # full dim or 128-multiple
    grid = (pl.cdiv(Np, nb),)
    return pl.pallas_call(
        _conv_pool_kernel,
        out_shape=jax.ShapeDtypeStruct((Cout, Np), jnp.bfloat16),
        grid=grid,
        in_specs=[
            pl.BlockSpec((4, K, nb), lambda i: (0, 0, i)),
            pl.BlockSpec((Cout, K), lambda i: (0, 0)),
            pl.BlockSpec((Cout, 1), lambda i: (0, 0)),
        ],
        out_specs=pl.BlockSpec((Cout, nb), lambda i: (0, i)),
        compiler_params=pltpu.CompilerParams(
            dimension_semantics=("parallel",)),
    )(patches.astype(jnp.bfloat16), wmat.astype(jnp.bfloat16), b2)


def pallas_fc_stack_t(xT, w1, b1, w2, b2, w3, b3, *, m_block=2048):
    """Fused 3-layer MLP in transposed orientation.

    xT: (K, B) bf16; weights torch-style (out, in); returns (N3, B) f32.
    """
    K, B = xT.shape
    N1, N2, N3 = w1.shape[0], w2.shape[0], w3.shape[0]
    bf16, f32 = jnp.bfloat16, jnp.float32
    bm = B if B <= m_block else m_block
    grid = (pl.cdiv(B, bm),)
    return pl.pallas_call(
        _fc_stack_kernel,
        out_shape=jax.ShapeDtypeStruct((N3, B), f32),
        grid=grid,
        in_specs=[
            pl.BlockSpec((K, bm), lambda i: (0, i)),
            pl.BlockSpec((N1, K), lambda i: (0, 0)),
            pl.BlockSpec((N1, 1), lambda i: (0, 0)),
            pl.BlockSpec((N2, N1), lambda i: (0, 0)),
            pl.BlockSpec((N2, 1), lambda i: (0, 0)),
            pl.BlockSpec((N3, N2), lambda i: (0, 0)),
            pl.BlockSpec((N3, 1), lambda i: (0, 0)),
        ],
        out_specs=pl.BlockSpec((N3, bm), lambda i: (0, i)),
        compiler_params=pltpu.CompilerParams(
            dimension_semantics=("parallel",)),
    )(xT.astype(bf16),
      w1.astype(bf16), b1.reshape(N1, 1).astype(f32),
      w2.astype(bf16), b2.reshape(N2, 1).astype(f32),
      w3.astype(bf16), b3.reshape(N3, 1).astype(f32))


# ---------------------------------------------------------------------------
# XLA glue: im2col with pool-window grouping (built in bf16)
# ---------------------------------------------------------------------------
def _make_pool_patches(x_cbhw, k, *, col_order):
    """x: (Cin, B, H, W) bf16 -> (4, k*k*Cin, Np) bf16.

    Feature order along K is (kh, kw, cin).
    col_order == "bhw": columns ordered (b, ph, pw)   (Np = B*Hp*Wp)
    col_order == "hwb": columns ordered (ph, pw, b)   (Np = Hp*Wp*B)
    Group m = 2*di + dj corresponds to pool-window offset (di, dj)."""
    Cin, B, H, W = x_cbhw.shape
    Ho, Wo = H - k + 1, W - k + 1
    Hp, Wp = Ho // 2, Wo // 2
    slabs = [x_cbhw[:, :, kh:kh + Ho, kw:kw + Wo]
             for kh in range(k) for kw in range(k)]
    s = jnp.stack(slabs, axis=0)                       # (k*k, Cin, B, Ho, Wo)
    groups = []
    for di in range(2):
        for dj in range(2):
            g = s[:, :, :, di::2, dj::2]               # (k*k, Cin, B, Hp, Wp)
            if col_order == "hwb":
                g = jnp.transpose(g, (0, 1, 3, 4, 2))  # (k*k, Cin, Hp, Wp, B)
            groups.append(g.reshape(k * k * Cin, B * Hp * Wp))
    return jnp.stack(groups, axis=0), (Hp, Wp)


# ---------------------------------------------------------------------------
# LeNet5 forward
# ---------------------------------------------------------------------------
def lenet5_forward(x_nchw, p):
    B = x_nchw.shape[0]
    bf16 = jnp.bfloat16
    # cast BEFORE the patch build so the slab is written to HBM as bf16
    x = jnp.transpose(x_nchw, (1, 0, 2, 3)).astype(bf16)       # (3, B, 32, 32)

    # Stage 1: conv1(5x5) + bias + maxpool2x2, fused.  columns (b, hp, wp)
    p1, (h1, w1_) = _make_pool_patches(x, 5, col_order="bhw")  # (4, 75, B*196)
    wm1 = jnp.transpose(p["conv1_w"], (0, 2, 3, 1)).reshape(6, 75)
    o1 = pallas_conv_pool(p1, wm1, p["conv1_b"])               # (6, B*196) bf16
    o1 = o1.reshape(6, B, h1, w1_)                             # (6, B, 14, 14)

    # Stage 2: conv2(5x5) + bias + maxpool2x2, fused.  columns (hp, pw, b)
    p2, (h2, w2_) = _make_pool_patches(o1, 5, col_order="hwb")  # (4, 150, 25*B)
    wm2 = jnp.transpose(p["conv2_w"], (0, 2, 3, 1)).reshape(16, 150)
    o2 = pallas_conv_pool(p2, wm2, p["conv2_b"])               # (16, 25*B) bf16

    # Free (leading-dim) reshape to torch's flatten order (c, ph, pw) as rows:
    featT = o2.reshape(16 * h2 * w2_, B)                       # (400, B)

    # Fused FC stack in transposed orientation; pad fc3 10->16 rows so the
    # output block is sublane-aligned and lane-dense on B; slice outside.
    w3p = jnp.pad(p["fc3_w"], ((0, 6), (0, 0)))
    b3p = jnp.pad(p["fc3_b"], (0, 6))
    outT = pallas_fc_stack_t(featT,
                             p["fc1_w"], p["fc1_b"],
                             p["fc2_w"], p["fc2_b"],
                             w3p, b3p)                         # (16, B) f32
    return jnp.transpose(outT[:10, :])                         # (B, 10)


# Plain-JAX reference (mirrors PyTorch semantics) for a correctness check.
def lenet5_reference(x_nchw, p):
    def conv(x, w, b):
        y = jax.lax.conv_general_dilated(
            x, w, window_strides=(1, 1), padding="VALID",
            dimension_numbers=("NCHW", "OIHW", "NCHW"))
        return y + b.reshape(1, -1, 1, 1)

    def pool(x):
        B, C, H, W = x.shape
        return x.reshape(B, C, H // 2, 2, W // 2, 2).max(axis=(3, 5))

    x = conv(x_nchw, p["conv1_w"], p["conv1_b"])
    x = pool(x)
    x = conv(x, p["conv2_w"], p["conv2_b"])
    x = pool(x)
    x = x.reshape(x.shape[0], 16 * 5 * 5)
    x = jnp.maximum(x @ p["fc1_w"].T + p["fc1_b"], 0.0)
    x = jnp.maximum(x @ p["fc2_w"].T + p["fc2_b"], 0.0)
    return x @ p["fc3_w"].T + p["fc3_b"]


def init_params(key):
    ks = jax.random.split(key, 10)
    n = lambda k, s, sc: (jax.random.normal(k, s, jnp.float32) * sc)
    return {
        "conv1_w": n(ks[0], (6, 3, 5, 5), 0.1),
        "conv1_b": n(ks[1], (6,), 0.1),
        "conv2_w": n(ks[2], (16, 6, 5, 5), 0.1),
        "conv2_b": n(ks[3], (16,), 0.1),
        "fc1_w": n(ks[4], (120, 400), 0.05),   # torch Linear: (out, in)
        "fc1_b": n(ks[5], (120,), 0.05),
        "fc2_w": n(ks[6], (84, 120), 0.05),
        "fc2_b": n(ks[7], (84,), 0.05),
        "fc3_w": n(ks[8], (10, 84), 0.05),
        "fc3_b": n(ks[9], (10,), 0.05),
    }


if __name__ == "__main__":
    key = jax.random.PRNGKey(0)
    k_params, k_x = jax.random.split(key)
    params = init_params(k_params)

    # Spatial size must be 32 (CIFAR-10) so the flatten is exactly 16*5*5.
    batch = 2
    x = jax.random.normal(k_x, (batch, 3, 32, 32), jnp.float32)

    out = jax.jit(lenet5_forward)(x, params)
    out = jax.block_until_ready(out)
    assert out.shape == (batch, 10), out.shape

    ref = jax.block_until_ready(lenet5_reference(x, params))
    assert jnp.allclose(out, ref, rtol=2e-2, atol=2e-2), (
        float(jnp.max(jnp.abs(out - ref))))

    print("KERNEL_OK")
</pallas_src>

<mosaic_0001>
module attributes {stable_mosaic.version = 11 : i64} {
  func.func @_conv_pool_kernel(%arg0: i32, %arg1: memref<4x75x392xbf16, #tpu.memory_space<vmem>>, %arg2: memref<6x75xbf16, #tpu.memory_space<vmem>>, %arg3: memref<6x1xf32, #tpu.memory_space<vmem>>, %arg4: memref<6x392xbf16, #tpu.memory_space<vmem>>) attributes {dimension_semantics = [#tpu.dimension_semantics<parallel>], iteration_bounds = array<i64: 1>, scalar_prefetch = 0 : i64, scratch_operands = 0 : i64, tpu.core_type = #tpu.core_type<tc>, window_params = [{transform_indices = @transform_0, window_bounds = array<i64: 4, 75, 392>}, {pipeline_mode = #tpu.pipeline_mode<synchronous>, transform_indices = @transform_1, window_bounds = array<i64: 6, 75>}, {pipeline_mode = #tpu.pipeline_mode<synchronous>, transform_indices = @transform_2, window_bounds = array<i64: 6, 1>}, {transform_indices = @transform_3, window_bounds = array<i64: 6, 392>}]} {
    %c0 = arith.constant 0 : index
    %c0_0 = arith.constant 0 : index
    %0 = vector.load %arg2[%c0, %c0_0] : memref<6x75xbf16, #tpu.memory_space<vmem>>, vector<6x75xbf16>
    %c0_1 = arith.constant 0 : index
    %c0_2 = arith.constant 0 : index
    %c0_3 = arith.constant 0 : index
    %1 = vector.load %arg1[%c0_1, %c0_2, %c0_3] : memref<4x75x392xbf16, #tpu.memory_space<vmem>>, vector<1x75x392xbf16>
    %2 = vector.shape_cast %1 : vector<1x75x392xbf16> to vector<75x392xbf16>
    %cst = arith.constant dense<0.000000e+00> : vector<6x392xf32>
    %3 = tpu.matmul %0, %2, %cst {dimension_numbers = #tpu.dot_dimension_numbers<[1], [0], [0], [1], [0, 0, 1, 1], [], []>} : vector<6x75xbf16>, vector<75x392xbf16>, vector<6x392xf32> -> vector<6x392xf32>
    %c1 = arith.constant 1 : index
    %c0_4 = arith.constant 0 : index
    %c0_5 = arith.constant 0 : index
    %4 = vector.load %arg1[%c1, %c0_4, %c0_5] : memref<4x75x392xbf16, #tpu.memory_space<vmem>>, vector<1x75x392xbf16>
    %5 = vector.shape_cast %4 : vector<1x75x392xbf16> to vector<75x392xbf16>
    %cst_6 = arith.constant dense<0.000000e+00> : vector<6x392xf32>
    %6 = tpu.matmul %0, %5, %cst_6 {dimension_numbers = #tpu.dot_dimension_numbers<[1], [0], [0], [1], [0, 0, 1, 1], [], []>} : vector<6x75xbf16>, vector<75x392xbf16>, vector<6x392xf32> -> vector<6x392xf32>
    %c2 = arith.constant 2 : index
    %c0_7 = arith.constant 0 : index
    %c0_8 = arith.constant 0 : index
    %7 = vector.load %arg1[%c2, %c0_7, %c0_8] : memref<4x75x392xbf16, #tpu.memory_space<vmem>>, vector<1x75x392xbf16>
    %8 = vector.shape_cast %7 : vector<1x75x392xbf16> to vector<75x392xbf16>
    %cst_9 = arith.constant dense<0.000000e+00> : vector<6x392xf32>
    %9 = tpu.matmul %0, %8, %cst_9 {dimension_numbers = #tpu.dot_dimension_numbers<[1], [0], [0], [1], [0, 0, 1, 1], [], []>} : vector<6x75xbf16>, vector<75x392xbf16>, vector<6x392xf32> -> vector<6x392xf32>
    %c3 = arith.constant 3 : index
    %c0_10 = arith.constant 0 : index
    %c0_11 = arith.constant 0 : index
    %10 = vector.load %arg1[%c3, %c0_10, %c0_11] : memref<4x75x392xbf16, #tpu.memory_space<vmem>>, vector<1x75x392xbf16>
    %11 = vector.shape_cast %10 : vector<1x75x392xbf16> to vector<75x392xbf16>
    %cst_12 = arith.constant dense<0.000000e+00> : vector<6x392xf32>
    %12 = tpu.matmul %0, %11, %cst_12 {dimension_numbers = #tpu.dot_dimension_numbers<[1], [0], [0], [1], [0, 0, 1, 1], [], []>} : vector<6x75xbf16>, vector<75x392xbf16>, vector<6x392xf32> -> vector<6x392xf32>
    %13 = arith.maximumf %3, %6 : vector<6x392xf32>
    %14 = arith.maximumf %9, %12 : vector<6x392xf32>
    %15 = arith.maximumf %13, %14 : vector<6x392xf32>
    %c0_13 = arith.constant 0 : index
    %c0_14 = arith.constant 0 : index
    %16 = vector.load %arg3[%c0_13, %c0_14] : memref<6x1xf32, #tpu.memory_space<vmem>>, vector<6x1xf32>
    %17 = vector.broadcast %16 : vector<6x1xf32> to vector<6x392xf32>
    %18 = arith.addf %15, %17 : vector<6x392xf32>
    %19 = arith.truncf %18 : vector<6x392xf32> to vector<6x392xbf16>
    %c0_15 = arith.constant 0 : index
    %c0_16 = arith.constant 0 : index
    %20 = vector.load %arg4[%c0_15, %c0_16] : memref<6x392xbf16, #tpu.memory_space<vmem>>, vector<6x392xbf16>
    tpu.vector_store %arg4[%c0_15, %c0_16], %19 {strides = array<i32>} : memref<6x392xbf16, #tpu.memory_space<vmem>>, vector<6x392xbf16>,
    return
  }
  func.func @transform_0(%arg0: i32) -> (i32, i32, i32) {
    %c0_i32 = arith.constant 0 : i32
    %c0_i32_0 = arith.constant 0 : i32
    %c0_i32_1 = arith.constant 0 : i32
    return %c0_i32, %c0_i32_0, %arg0 : i32, i32, i32
  }
  func.func @transform_1(%arg0: i32) -> (i32, i32) {
    %c0_i32 = arith.constant 0 : i32
    %c0_i32_0 = arith.constant 0 : i32
    %c0_i32_1 = arith.constant 0 : i32
    return %c0_i32, %c0_i32_0 : i32, i32
  }
  func.func @transform_2(%arg0: i32) -> (i32, i32) {
    %c0_i32 = arith.constant 0 : i32
    %c0_i32_0 = arith.constant 0 : i32
    %c0_i32_1 = arith.constant 0 : i32
    return %c0_i32, %c0_i32_0 : i32, i32
  }
  func.func @transform_3(%arg0: i32) -> (i32, i32) {
    %c0_i32 = arith.constant 0 : i32
    %c0_i32_0 = arith.constant 0 : i32
    return %c0_i32, %arg0 : i32, i32
  }
}

module attributes {stable_mosaic.version = 11 : i64} {
  func.func @_conv_pool_kernel(%arg0: i32, %arg1: memref<4x150x50xbf16, #tpu.memory_space<vmem>>, %arg2: memref<16x150xbf16, #tpu.memory_space<vmem>>, %arg3: memref<16x1xf32, #tpu.memory_space<vmem>>, %arg4: memref<16x50xbf16, #tpu.memory_space<vmem>>) attributes {dimension_semantics = [#tpu.dimension_semantics<parallel>], iteration_bounds = array<i64: 1>, scalar_prefetch = 0 : i64, scratch_operands = 0 : i64, tpu.core_type = #tpu.core_type<tc>, window_params = [{transform_indices = @transform_0, window_bounds = array<i64: 4, 150, 50>}, {pipeline_mode = #tpu.pipeline_mode<synchronous>, transform_indices = @transform_1, window_bounds = array<i64: 16, 150>}, {pipeline_mode = #tpu.pipeline_mode<synchronous>, transform_indices = @transform_2, window_bounds = array<i64: 16, 1>}, {transform_indices = @transform_3, window_bounds = array<i64: 16, 50>}]} {
    %c0 = arith.constant 0 : index
    %c0_0 = arith.constant 0 : index
    %0 = vector.load %arg2[%c0, %c0_0] : memref<16x150xbf16, #tpu.memory_space<vmem>>, vector<16x150xbf16>
    %c0_1 = arith.constant 0 : index
    %c0_2 = arith.constant 0 : index
    %c0_3 = arith.constant 0 : index
    %1 = vector.load %arg1[%c0_1, %c0_2, %c0_3] : memref<4x150x50xbf16, #tpu.memory_space<vmem>>, vector<1x150x50xbf16>
    %2 = vector.shape_cast %1 : vector<1x150x50xbf16> to vector<150x50xbf16>
    %cst = arith.constant dense<0.000000e+00> : vector<16x50xf32>
    %3 = tpu.matmul %0, %2, %cst {dimension_numbers = #tpu.dot_dimension_numbers<[1], [0], [0], [1], [0, 0, 1, 1], [], []>} : vector<16x150xbf16>, vector<150x50xbf16>, vector<16x50xf32> -> vector<16x50xf32>
    %c1 = arith.constant 1 : index
    %c0_4 = arith.constant 0 : index
    %c0_5 = arith.constant 0 : index
    %4 = vector.load %arg1[%c1, %c0_4, %c0_5] : memref<4x150x50xbf16, #tpu.memory_space<vmem>>, vector<1x150x50xbf16>
    %5 = vector.shape_cast %4 : vector<1x150x50xbf16> to vector<150x50xbf16>
    %cst_6 = arith.constant dense<0.000000e+00> : vector<16x50xf32>
    %6 = tpu.matmul %0, %5, %cst_6 {dimension_numbers = #tpu.dot_dimension_numbers<[1], [0], [0], [1], [0, 0, 1, 1], [], []>} : vector<16x150xbf16>, vector<150x50xbf16>, vector<16x50xf32> -> vector<16x50xf32>
    %c2 = arith.constant 2 : index
    %c0_7 = arith.constant 0 : index
    %c0_8 = arith.constant 0 : index
    %7 = vector.load %arg1[%c2, %c0_7, %c0_8] : memref<4x150x50xbf16, #tpu.memory_space<vmem>>, vector<1x150x50xbf16>
    %8 = vector.shape_cast %7 : vector<1x150x50xbf16> to vector<150x50xbf16>
    %cst_9 = arith.constant dense<0.000000e+00> : vector<16x50xf32>
    %9 = tpu.matmul %0, %8, %cst_9 {dimension_numbers = #tpu.dot_dimension_numbers<[1], [0], [0], [1], [0, 0, 1, 1], [], []>} : vector<16x150xbf16>, vector<150x50xbf16>, vector<16x50xf32> -> vector<16x50xf32>
    %c3 = arith.constant 3 : index
    %c0_10 = arith.constant 0 : index
    %c0_11 = arith.constant 0 : index
    %10 = vector.load %arg1[%c3, %c0_10, %c0_11] : memref<4x150x50xbf16, #tpu.memory_space<vmem>>, vector<1x150x50xbf16>
    %11 = vector.shape_cast %10 : vector<1x150x50xbf16> to vector<150x50xbf16>
    %cst_12 = arith.constant dense<0.000000e+00> : vector<16x50xf32>
    %12 = tpu.matmul %0, %11, %cst_12 {dimension_numbers = #tpu.dot_dimension_numbers<[1], [0], [0], [1], [0, 0, 1, 1], [], []>} : vector<16x150xbf16>, vector<150x50xbf16>, vector<16x50xf32> -> vector<16x50xf32>
    %13 = arith.maximumf %3, %6 : vector<16x50xf32>
    %14 = arith.maximumf %9, %12 : vector<16x50xf32>
    %15 = arith.maximumf %13, %14 : vector<16x50xf32>
    %c0_13 = arith.constant 0 : index
    %c0_14 = arith.constant 0 : index
    %16 = vector.load %arg3[%c0_13, %c0_14] : memref<16x1xf32, #tpu.memory_space<vmem>>, vector<16x1xf32>
    %17 = vector.broadcast %16 : vector<16x1xf32> to vector<16x50xf32>
    %18 = arith.addf %15, %17 : vector<16x50xf32>
    %19 = arith.truncf %18 : vector<16x50xf32> to vector<16x50xbf16>
    %c0_15 = arith.constant 0 : index
    %c0_16 = arith.constant 0 : index
    %20 = vector.load %arg4[%c0_15, %c0_16] : memref<16x50xbf16, #tpu.memory_space<vmem>>, vector<16x50xbf16>
    tpu.vector_store %arg4[%c0_15, %c0_16], %19 {strides = array<i32>} : memref<16x50xbf16, #tpu.memory_space<vmem>>, vector<16x50xbf16>,
    return
  }
  func.func @transform_0(%arg0: i32) -> (i32, i32, i32) {
    %c0_i32 = arith.constant 0 : i32
    %c0_i32_0 = arith.constant 0 : i32
    %c0_i32_1 = arith.constant 0 : i32
    return %c0_i32, %c0_i32_0, %arg0 : i32, i32, i32
  }
  func.func @transform_1(%arg0: i32) -> (i32, i32) {
    %c0_i32 = arith.constant 0 : i32
    %c0_i32_0 = arith.constant 0 : i32
    %c0_i32_1 = arith.constant 0 : i32
    return %c0_i32, %c0_i32_0 : i32, i32
  }
  func.func @transform_2(%arg0: i32) -> (i32, i32) {
    %c0_i32 = arith.constant 0 : i32
    %c0_i32_0 = arith.constant 0 : i32
    %c0_i32_1 = arith.constant 0 : i32
    return %c0_i32, %c0_i32_0 : i32, i32
  }
  func.func @transform_3(%arg0: i32) -> (i32, i32) {
    %c0_i32 = arith.constant 0 : i32
    %c0_i32_0 = arith.constant 0 : i32
    return %c0_i32, %arg0 : i32, i32
  }
}

module attributes {stable_mosaic.version = 11 : i64} {
  func.func @_fc_stack_kernel(%arg0: i32, %arg1: memref<400x2xbf16, #tpu.memory_space<vmem>>, %arg2: memref<120x400xbf16, #tpu.memory_space<vmem>>, %arg3: memref<120x1xf32, #tpu.memory_space<vmem>>, %arg4: memref<84x120xbf16, #tpu.memory_space<vmem>>, %arg5: memref<84x1xf32, #tpu.memory_space<vmem>>, %arg6: memref<16x84xbf16, #tpu.memory_space<vmem>>, %arg7: memref<16x1xf32, #tpu.memory_space<vmem>>, %arg8: memref<16x2xf32, #tpu.memory_space<vmem>>) attributes {dimension_semantics = [#tpu.dimension_semantics<parallel>], iteration_bounds = array<i64: 1>, scalar_prefetch = 0 : i64, scratch_operands = 0 : i64, tpu.core_type = #tpu.core_type<tc>, window_params = [{transform_indices = @transform_0, window_bounds = array<i64: 400, 2>}, {pipeline_mode = #tpu.pipeline_mode<synchronous>, transform_indices = @transform_1, window_bounds = array<i64: 120, 400>}, {pipeline_mode = #tpu.pipeline_mode<synchronous>, transform_indices = @transform_2, window_bounds = array<i64: 120, 1>}, {pipeline_mode = #tpu.pipeline_mode<synchronous>, transform_indices = @transform_3, window_bounds = array<i64: 84, 120>}, {pipeline_mode = #tpu.pipeline_mode<synchronous>, transform_indices = @transform_4, window_bounds = array<i64: 84, 1>}, {pipeline_mode = #tpu.pipeline_mode<synchronous>, transform_indices = @transform_5, window_bounds = array<i64: 16, 84>}, {pipeline_mode = #tpu.pipeline_mode<synchronous>, transform_indices = @transform_6, window_bounds = array<i64: 16, 1>}, {transform_indices = @transform_7, window_bounds = array<i64: 16, 2>}]} {
    %c0 = arith.constant 0 : index
    %c0_0 = arith.constant 0 : index
    %0 = vector.load %arg2[%c0, %c0_0] : memref<120x400xbf16, #tpu.memory_space<vmem>>, vector<120x400xbf16>
    %c0_1 = arith.constant 0 : index
    %c0_2 = arith.constant 0 : index
    %1 = vector.load %arg1[%c0_1, %c0_2] : memref<400x2xbf16, #tpu.memory_space<vmem>>, vector<400x2xbf16>
    %cst = arith.constant dense<0.000000e+00> : vector<120x2xf32>
    %2 = tpu.matmul %0, %1, %cst {dimension_numbers = #tpu.dot_dimension_numbers<[1], [0], [0], [1], [0, 0, 1, 1], [], []>} : vector<120x400xbf16>, vector<400x2xbf16>, vector<120x2xf32> -> vector<120x2xf32>
    %c0_3 = arith.constant 0 : index
    %c0_4 = arith.constant 0 : index
    %3 = vector.load %arg3[%c0_3, %c0_4] : memref<120x1xf32, #tpu.memory_space<vmem>>, vector<120x1xf32>
    %4 = vector.broadcast %3 : vector<120x1xf32> to vector<120x2xf32>
    %5 = arith.addf %2, %4 : vector<120x2xf32>
    %cst_5 = arith.constant 0.000000e+00 : f32
    %6 = vector.broadcast %cst_5 : f32 to vector<120x2xf32>
    %7 = arith.maximumf %5, %6 : vector<120x2xf32>
    %8 = arith.truncf %7 : vector<120x2xf32> to vector<120x2xbf16>
    %c0_6 = arith.constant 0 : index
    %c0_7 = arith.constant 0 : index
    %9 = vector.load %arg4[%c0_6, %c0_7] : memref<84x120xbf16, #tpu.memory_space<vmem>>, vector<84x120xbf16>
    %cst_8 = arith.constant dense<0.000000e+00> : vector<84x2xf32>
    %10 = tpu.matmul %9, %8, %cst_8 {dimension_numbers = #tpu.dot_dimension_numbers<[1], [0], [0], [1], [0, 0, 1, 1], [], []>} : vector<84x120xbf16>, vector<120x2xbf16>, vector<84x2xf32> -> vector<84x2xf32>
    %c0_9 = arith.constant 0 : index
    %c0_10 = arith.constant 0 : index
    %11 = vector.load %arg5[%c0_9, %c0_10] : memref<84x1xf32, #tpu.memory_space<vmem>>, vector<84x1xf32>
    %12 = vector.broadcast %11 : vector<84x1xf32> to vector<84x2xf32>
    %13 = arith.addf %10, %12 : vector<84x2xf32>
    %cst_11 = arith.constant 0.000000e+00 : f32
    %14 = vector.broadcast %cst_11 : f32 to vector<84x2xf32>
    %15 = arith.maximumf %13, %14 : vector<84x2xf32>
    %16 = arith.truncf %15 : vector<84x2xf32> to vector<84x2xbf16>
    %c0_12 = arith.constant 0 : index
    %c0_13 = arith.constant 0 : index
    %17 = vector.load %arg6[%c0_12, %c0_13] : memref<16x84xbf16, #tpu.memory_space<vmem>>, vector<16x84xbf16>
    %cst_14 = arith.constant dense<0.000000e+00> : vector<16x2xf32>
    %18 = tpu.matmul %17, %16, %cst_14 {dimension_numbers = #tpu.dot_dimension_numbers<[1], [0], [0], [1], [0, 0, 1, 1], [], []>} : vector<16x84xbf16>, vector<84x2xbf16>, vector<16x2xf32> -> vector<16x2xf32>
    %c0_15 = arith.constant 0 : index
    %c0_16 = arith.constant 0 : index
    %19 = vector.load %arg7[%c0_15, %c0_16] : memref<16x1xf32, #tpu.memory_space<vmem>>, vector<16x1xf32>
    %20 = vector.broadcast %19 : vector<16x1xf32> to vector<16x2xf32>
    %21 = arith.addf %18, %20 : vector<16x2xf32>
    %c0_17 = arith.constant 0 : index
    %c0_18 = arith.constant 0 : index
    %22 = vector.load %arg8[%c0_17, %c0_18] : memref<16x2xf32, #tpu.memory_space<vmem>>, vector<16x2xf32>
    tpu.vector_store %arg8[%c0_17, %c0_18], %21 {strides = array<i32>} : memref<16x2xf32, #tpu.memory_space<vmem>>, vector<16x2xf32>,
    return
  }
  func.func @transform_0(%arg0: i32) -> (i32, i32) {
    %c0_i32 = arith.constant 0 : i32
    %c0_i32_0 = arith.constant 0 : i32
    return %c0_i32, %arg0 : i32, i32
  }
  func.func @transform_1(%arg0: i32) -> (i32, i32) {
    %c0_i32 = arith.constant 0 : i32
    %c0_i32_0 = arith.constant 0 : i32
    %c0_i32_1 = arith.constant 0 : i32
    return %c0_i32, %c0_i32_0 : i32, i32
  }
  func.func @transform_2(%arg0: i32) -> (i32, i32) {
    %c0_i32 = arith.constant 0 : i32
    %c0_i32_0 = arith.constant 0 : i32
    %c0_i32_1 = arith.constant 0 : i32
    return %c0_i32, %c0_i32_0 : i32, i32
  }
  func.func @transform_3(%arg0: i32) -> (i32, i32) {
    %c0_i32 = arith.constant 0 : i32
    %c0_i32_0 = arith.constant 0 : i32
    %c0_i32_1 = arith.constant 0 : i32
    return %c0_i32, %c0_i32_0 : i32, i32
  }
  func.func @transform_4(%arg0: i32) -> (i32, i32) {
    %c0_i32 = arith.constant 0 : i32
    %c0_i32_0 = arith.constant 0 : i32
    %c0_i32_1 = arith.constant 0 : i32
    return %c0_i32, %c0_i32_0 : i32, i32
  }
  func.func @transform_5(%arg0: i32) -> (i32, i32) {
    %c0_i32 = arith.constant 0 : i32
    %c0_i32_0 = arith.constant 0 : i32
    %c0_i32_1 = arith.constant 0 : i32
    return %c0_i32, %c0_i32_0 : i32, i32
  }
  func.func @transform_6(%arg0: i32) -> (i32, i32) {
    %c0_i32 = arith.constant 0 : i32
    %c0_i32_0 = arith.constant 0 : i32
    %c0_i32_1 = arith.constant 0 : i32
    return %c0_i32, %c0_i32_0 : i32, i32
  }
  func.func @transform_7(%arg0: i32) -> (i32, i32) {
    %c0_i32 = arith.constant 0 : i32
    %c0_i32_0 = arith.constant 0 : i32
    return %c0_i32, %arg0 : i32, i32
  }
}

</mosaic_0001>

<llo_original>
// kernel: lenet5_forward.3
$region0: #{lenet5_forward.3}
  #allocation0 [shape = 'u32[]', space=smem, size = 0x4, offset = 0x4, fixed_abs, tag = 'smem constant byte address 0x4 - core index']
  #allocation1 [shape = 'u32[144,128]{1,0:T(1,128)}', space=vmem, size = 0x12000, scoped, tag = 'internal scratch']
  %s0 = inlined_call_operand.vmem [shape: bf16[4,75,392], index: 0, kind: input, shape index: {}]
  %s1 = inlined_call_operand.vmem [shape: bf16[6,75], index: 1, kind: input, shape index: {}]
  %s2 = inlined_call_operand.vmem [shape: f32[6,1], index: 2, kind: input, shape index: {}]
  %s3 = inlined_call_operand.vmem [shape: bf16[6,392], index: 3, kind: output, shape index: {}]
  %s4 = sld [smem:[#allocation0]]
  $region22: #{lenet5_forward.3} parent=0
    _
  %s6 = ssub.s32 1, %s4
  %s7 = scalar_select 0, %s6, %s4
  // Predicated region
  $region2: #{lenet5_forward.3} parent=0 // pred_check
    _
  $region3: #{lenet5_forward.3} parent=0 // pred_check_branch
    %9 = sbr.rel (0) target = $region5
  $region4: #{lenet5_forward.3} parent=0 // pred_region
    _
  $region5: #{lenet5_forward.3} parent=0 // pred_fallthru
    _
  // Predicated region
  $region6: #{lenet5_forward.3} parent=0 // pred_check
    _
  $region7: #{lenet5_forward.3} parent=0 // pred_check_branch
    %11 = sbr.rel (0) target = $region9
  $region8: #{lenet5_forward.3} parent=0 // pred_region
    _
  $region9: #{lenet5_forward.3} parent=0 // pred_fallthru
    _
  // Predicated region
  $region10: #{lenet5_forward.3} parent=0 // pred_check
    _
  $region11: #{lenet5_forward.3} parent=0 // pred_check_branch
    %13 = sbr.rel (0) target = $region13
  $region12: #{lenet5_forward.3} parent=0 // pred_region
    _
  $region13: #{lenet5_forward.3} parent=0 // pred_fallthru
    _
  %v15 = vld [vmem:[%s1] sm:$0x7]
  %v16 = vld [vmem:[%s0] sm:$0xff]
  %v17 = vld [vmem:[%s0 + $0x8] sm:$0xff]
  %v18 = vld [vmem:[%s0 + $0x10] sm:$0xff]
  %v19 = vld [vmem:[%s0 + $0x18] sm:$0xff]
  %v20 = vld [vmem:[%s0 + $0x20] sm:$0xff]
  %v21 = vld [vmem:[%s0 + $0x28] sm:$0xff]
  %v22 = vld [vmem:[%s0 + $0x30] sm:$0xff]
  %v23 = vld [vmem:[%s0 + $0x38] sm:$0xff]
  %v24 = vld [vmem:[%s0 + $0x40] sm:$0xff]
  %v25 = vld [vmem:[%s0 + $0x48] sm:$0xff]
  %v26 = vld [vmem:[%s0 + $0x50] sm:$0xff]
  %v27 = vld [vmem:[%s0 + $0x58] sm:$0xff]
  %v28 = vld [vmem:[%s0 + $0x60] sm:$0xff]
  %v29 = vld [vmem:[%s0 + $0x68] sm:$0xff]
  %v30 = vld [vmem:[%s0 + $0x70] sm:$0xff]
  %v31 = vld [vmem:[%s0 + $0x78] sm:$0xff]
  %v32 = vld [vmem:[%s0 + $0x80] sm:$0xff]
  %v33 = vld [vmem:[%s0 + $0x88] sm:$0xff]
  %v34 = vld [vmem:[%s0 + $0x90] sm:$0x33]
  %v35 = vld [vmem:[%s0 + $0x98] sm:$0x33]
  %v56 = vunpack.c.l.b16 %v16
  %v57 = vunpack.c.h.b16 %v16
  %v58 = vunpack.c.l.b16 %v17
  %v59 = vunpack.c.h.b16 %v17
  %v60 = vunpack.c.l.b16 %v18
  %v61 = vunpack.c.h.b16 %v18
  %v62 = vunpack.c.l.b16 %v19
  %v63 = vunpack.c.h.b16 %v19
  %v64 = vunpack.c.l.b16 %v20
  %v65 = vunpack.c.h.b16 %v20
  %v66 = vunpack.c.l.b16 %v21
  %v67 = vunpack.c.h.b16 %v21
  %v68 = vunpack.c.l.b16 %v22
  %v69 = vunpack.c.h.b16 %v22
  %v70 = vunpack.c.l.b16 %v23
  %v71 = vunpack.c.h.b16 %v23
  %v72 = vunpack.c.l.b16 %v24
  %v73 = vunpack.c.h.b16 %v24
  %v74 = vunpack.c.l.b16 %v25
  %v75 = vunpack.c.h.b16 %v25
  %v76 = vunpack.c.l.b16 %v26
  %v77 = vunpack.c.h.b16 %v26
  %v78 = vunpack.c.l.b16 %v27
  %v79 = vunpack.c.h.b16 %v27
  %v80 = vunpack.c.l.b16 %v28
  %v81 = vunpack.c.h.b16 %v28
  %v82 = vunpack.c.l.b16 %v29
  %v83 = vunpack.c.h.b16 %v29
  %v84 = vunpack.c.l.b16 %v30
  %v85 = vunpack.c.h.b16 %v30
  %v86 = vunpack.c.l.b16 %v31
  %v87 = vunpack.c.h.b16 %v31
  %v88 = vunpack.c.l.b16 %v32
  %v89 = vunpack.c.h.b16 %v32
  %v90 = vunpack.c.l.b16 %v33
  %v91 = vunpack.c.h.b16 %v33
  %v92 = vunpack.c.l.b16 %v34
  %v93 = vunpack.c.h.b16 %v34
  %v94 = vunpack.c.l.b16 %v35
  %v95 = vunpack.c.h.b16 %v35
  %v96 = vpack.c.b16 %v60, %v56
  %v97 = vpack.c.b16 %v61, %v57
  %v98 = vpack.c.b16 %v62, %v58
  %v99 = vpack.c.b16 %v63, %v59
  %v100 = vpack.c.b16 %v68, %v64
  %v101 = vpack.c.b16 %v69, %v65
  %v102 = vpack.c.b16 %v70, %v66
  %v103 = vpack.c.b16 %v71, %v67
  %v104 = vpack.c.b16 %v76, %v72
  %v105 = vpack.c.b16 %v77, %v73
  %v106 = vpack.c.b16 %v78, %v74
  %v107 = vpack.c.b16 %v79, %v75
  %v108 = vpack.c.b16 %v84, %v80
  %v109 = vpack.c.b16 %v85, %v81
  %v110 = vpack.c.b16 %v86, %v82
  %v111 = vpack.c.b16 %v87, %v83
  %v112 = vpack.c.b16 %v92, %v88
  %v113 = vpack.c.b16 %v93, %v89
  %v114 = vpack.c.b16 %v94, %v90
  %v115 = vpack.c.b16 %v95, %v91
  %vm132 = vcmask 613376
  %v134 = vsel %vm132, %v15, 0
  %vm136 = vcmask 1044480
  %vm137 = vcmask 1045504
  %v138 = vsel %vm136, 4294967295, 65535
  %v139 = vsel %vm137, %v138, 0
  %v141 = vand.u32 %v112, %v139
  %v144 = vand.u32 %v113, %v139
  %v147 = vand.u32 %v114, %v139
  %v150 = vand.u32 %v115, %v139
  %152 = vmatprep.subr.bf16.mxu0 %v97
  %153 = vmatpush1.bf16.msra.mxu0 %v96
  %154 = vmatprep.subr.bf16.mxu0 %v101
  %155 = vmatpush1.bf16.msra.mxu0 %v100
  %156 = vmatprep.subr.bf16.mxu0 %v105
  %157 = vmatpush1.bf16.msra.mxu0 %v104
  %158 = vmatprep.subr.bf16.mxu0 %v109
  %159 = vmatpush1.bf16.msra.mxu0 %v108
  %160 = vmatprep.subr.bf16.mxu0 %v144
  %161 = vmatpush1.bf16.msra.mxu0 %v141
  %162 = vmatprep.subr.bf16.mxu0 0
  %163 = vmatpush1.bf16.msra.mxu0 0
  %164 = vmatprep.subr.bf16.mxu0 0
  %165 = vmatpush1.bf16.msra.mxu0 0
  %166 = vmatprep.subr.bf16.mxu0 0
  %167 = vmatpush1.bf16.msra.mxu0 0
  %168 = vmatprep.subr.bf16.mxu0 0
  %169 = vmatpush1.bf16.msra.mxu0 0
  %170 = vmatprep.subr.bf16.mxu0 0
  %171 = vmatpush1.bf16.msra.mxu0 0
  %172 = vmatprep.subr.bf16.mxu0 0
  %173 = vmatpush1.bf16.msra.mxu0 0
  %174 = vmatprep.subr.bf16.mxu0 0
  %175 = vmatpush1.bf16.msra.mxu0 0
  %176 = vmatprep.subr.bf16.mxu0 0
  %177 = vmatpush1.bf16.msra.mxu0 0
  %178 = vmatprep.subr.bf16.mxu0 0
  %179 = vmatpush1.bf16.msra.mxu0 0
  %180 = vmatprep.subr.bf16.mxu0 0
  %181 = vmatpush1.bf16.msra.mxu0 0
  %182 = vmatprep.subr.bf16.mxu0 0
  %183 = vmatpush1.bf16.msra.mxu0 0
  %184 = vmatprep.mubr.bf16.mxu0 0
  %185 = vmatmul.mubr.bf16.gmra.mrb[0].mxu0 %v134
  %v186 = vpop.f32.mrb[0].mxu0
  %v187 = vadd.f32 0.0, %v186
  %v188 = vpop.f32.mrb[0].mxu0
  %v189 = vadd.f32 0.0, %v188
  %v190 = vpop.f32.mrb[0].mxu0
  %v191 = vpop.f32.mrb[0].mxu0
  %192 = vdwg.mxu0
  %193 = vmatprep.subr.bf16.mxu0 %v99
  %194 = vmatpush1.bf16.msra.mxu0 %v98
  %195 = vmatprep.subr.bf16.mxu0 %v103
  %196 = vmatpush1.bf16.msra.mxu0 %v102
  %197 = vmatprep.subr.bf16.mxu0 %v107
  %198 = vmatpush1.bf16.msra.mxu0 %v106
  %199 = vmatprep.subr.bf16.mxu0 %v111
  %200 = vmatpush1.bf16.msra.mxu0 %v110
  %201 = vmatprep.subr.bf16.mxu0 %v150
  %202 = vmatpush1.bf16.msra.mxu0 %v147
  %203 = vmatprep.subr.bf16.mxu0 0
  %204 = vmatpush1.bf16.msra.mxu0 0
  %205 = vmatprep.subr.bf16.mxu0 0
  %206 = vmatpush1.bf16.msra.mxu0 0
  %207 = vmatprep.subr.bf16.mxu0 0
  %208 = vmatpush1.bf16.msra.mxu0 0
  %209 = vmatprep.subr.bf16.mxu0 0
  %210 = vmatpush1.bf16.msra.mxu0 0
  %211 = vmatprep.subr.bf16.mxu0 0
  %212 = vmatpush1.bf16.msra.mxu0 0
  %213 = vmatprep.subr.bf16.mxu0 0
  %214 = vmatpush1.bf16.msra.mxu0 0
  %215 = vmatprep.subr.bf16.mxu0 0
  %216 = vmatpush1.bf16.msra.mxu0 0
  %217 = vmatprep.subr.bf16.mxu0 0
  %218 = vmatpush1.bf16.msra.mxu0 0
  %219 = vmatprep.subr.bf16.mxu0 0
  %220 = vmatpush1.bf16.msra.mxu0 0
  %221 = vmatprep.subr.bf16.mxu0 0
  %222 = vmatpush1.bf16.msra.mxu0 0
  %223 = vmatprep.subr.bf16.mxu0 0
  %224 = vmatpush1.bf16.msra.mxu0 0
  %225 = vmatprep.mubr.bf16.mxu0 0
  %226 = vmatmul.mubr.bf16.gmra.mrb[0].mxu0 %v134
  %v227 = vpop.f32.mrb[0].mxu0
  %v228 = vadd.f32 0.0, %v227
  %v229 = vpop.f32.mrb[0].mxu0
  %v230 = vadd.f32 0.0, %v229
  %v231 = vpop.f32.mrb[0].mxu0
  %v232 = vpop.f32.mrb[0].mxu0
  %233 = vdwg.mxu0
  %s234 = scalar_lea.vmem %s0, 160
  %v235 = vld [vmem:[%s234] sm:$0xff]
  %v236 = vld [vmem:[%s234 + $0x8] sm:$0xff]
  %v237 = vld [vmem:[%s234 + $0x10] sm:$0xff]
  %v238 = vld [vmem:[%s234 + $0x18] sm:$0xff]
  %v239 = vld [vmem:[%s234 + $0x20] sm:$0xff]
  %v240 = vld [vmem:[%s234 + $0x28] sm:$0xff]
  %v241 = vld [vmem:[%s234 + $0x30] sm:$0xff]
  %v242 = vld [vmem:[%s234 + $0x38] sm:$0xff]
  %v243 = vld [vmem:[%s234 + $0x40] sm:$0xff]
  %v244 = vld [vmem:[%s234 + $0x48] sm:$0xff]
  %v245 = vld [vmem:[%s234 + $0x50] sm:$0xff]
  %v246 = vld [vmem:[%s234 + $0x58] sm:$0xff]
  %v247 = vld [vmem:[%s234 + $0x60] sm:$0xff]
  %v248 = vld [vmem:[%s234 + $0x68] sm:$0xff]
  %v249 = vld [vmem:[%s234 + $0x70] sm:$0xff]
  %v250 = vld [vmem:[%s234 + $0x78] sm:$0xff]
  %v251 = vld [vmem:[%s234 + $0x80] sm:$0xff]
  %v252 = vld [vmem:[%s234 + $0x88] sm:$0xff]
  %v253 = vld [vmem:[%s234 + $0x90] sm:$0x33]
  %v254 = vld [vmem:[%s234 + $0x98] sm:$0x33]
  %v275 = vunpack.c.l.b16 %v235
  %v276 = vunpack.c.h.b16 %v235
  %v277 = vunpack.c.l.b16 %v236
  %v278 = vunpack.c.h.b16 %v236
  %v279 = vunpack.c.l.b16 %v237
  %v280 = vunpack.c.h.b16 %v237
  %v281 = vunpack.c.l.b16 %v238
  %v282 = vunpack.c.h.b16 %v238
  %v283 = vunpack.c.l.b16 %v239
  %v284 = vunpack.c.h.b16 %v239
  %v285 = vunpack.c.l.b16 %v240
  %v286 = vunpack.c.h.b16 %v240
  %v287 = vunpack.c.l.b16 %v241
  %v288 = vunpack.c.h.b16 %v241
  %v289 = vunpack.c.l.b16 %v242
  %v290 = vunpack.c.h.b16 %v242
  %v291 = vunpack.c.l.b16 %v243
  %v292 = vunpack.c.h.b16 %v243
  %v293 = vunpack.c.l.b16 %v244
  %v294 = vunpack.c.h.b16 %v244
  %v295 = vunpack.c.l.b16 %v245
  %v296 = vunpack.c.h.b16 %v245
  %v297 = vunpack.c.l.b16 %v246
  %v298 = vunpack.c.h.b16 %v246
  %v299 = vunpack.c.l.b16 %v247
  %v300 = vunpack.c.h.b16 %v247
  %v301 = vunpack.c.l.b16 %v248
  %v302 = vunpack.c.h.b16 %v248
  %v303 = vunpack.c.l.b16 %v249
  %v304 = vunpack.c.h.b16 %v249
  %v305 = vunpack.c.l.b16 %v250
  %v306 = vunpack.c.h.b16 %v250
  %v307 = vunpack.c.l.b16 %v251
  %v308 = vunpack.c.h.b16 %v251
  %v309 = vunpack.c.l.b16 %v252
  %v310 = vunpack.c.h.b16 %v252
  %v311 = vunpack.c.l.b16 %v253
  %v312 = vunpack.c.h.b16 %v253
  %v313 = vunpack.c.l.b16 %v254
  %v314 = vunpack.c.h.b16 %v254
  %v315 = vpack.c.b16 %v279, %v275
  %v316 = vpack.c.b16 %v280, %v276
  %v317 = vpack.c.b16 %v281, %v277
  %v318 = vpack.c.b16 %v282, %v278
  %v319 = vpack.c.b16 %v287, %v283
  %v320 = vpack.c.b16 %v288, %v284
  %v321 = vpack.c.b16 %v289, %v285
  %v322 = vpack.c.b16 %v290, %v286
  %v323 = vpack.c.b16 %v295, %v291
  %v324 = vpack.c.b16 %v296, %v292
  %v325 = vpack.c.b16 %v297, %v293
  %v326 = vpack.c.b16 %v298, %v294
  %v327 = vpack.c.b16 %v303, %v299
  %v328 = vpack.c.b16 %v304, %v300
  %v329 = vpack.c.b16 %v305, %v301
  %v330 = vpack.c.b16 %v306, %v302
  %v331 = vpack.c.b16 %v311, %v307
  %v332 = vpack.c.b16 %v312, %v308
  %v333 = vpack.c.b16 %v313, %v309
  %v334 = vpack.c.b16 %v314, %v310
  %v352 = vand.u32 %v331, %v139
  %v355 = vand.u32 %v332, %v139
  %v358 = vand.u32 %v333, %v139
  %v361 = vand.u32 %v334, %v139
  %363 = vmatprep.subr.bf16.mxu0 %v316
  %364 = vmatpush1.bf16.msra.mxu0 %v315
  %365 = vmatprep.subr.bf16.mxu0 %v320
  %366 = vmatpush1.bf16.msra.mxu0 %v319
  %367 = vmatprep.subr.bf16.mxu0 %v324
  %368 = vmatpush1.bf16.msra.mxu0 %v323
  %369 = vmatprep.subr.bf16.mxu0 %v328
  %370 = vmatpush1.bf16.msra.mxu0 %v327
  %371 = vmatprep.subr.bf16.mxu0 %v355
  %372 = vmatpush1.bf16.msra.mxu0 %v352
  %373 = vmatprep.subr.bf16.mxu0 0
  %374 = vmatpush1.bf16.msra.mxu0 0
  %375 = vmatprep.subr.bf16.mxu0 0
  %376 = vmatpush1.bf16.msra.mxu0 0
  %377 = vmatprep.subr.bf16.mxu0 0
  %378 = vmatpush1.bf16.msra.mxu0 0
  %379 = vmatprep.subr.bf16.mxu0 0
  %380 = vmatpush1.bf16.msra.mxu0 0
  %381 = vmatprep.subr.bf16.mxu0 0
  %382 = vmatpush1.bf16.msra.mxu0 0
  %383 = vmatprep.subr.bf16.mxu0 0
  %384 = vmatpush1.bf16.msra.mxu0 0
  %385 = vmatprep.subr.bf16.mxu0 0
  %386 = vmatpush1.bf16.msra.mxu0 0
  %387 = vmatprep.subr.bf16.mxu0 0
  %388 = vmatpush1.bf16.msra.mxu0 0
  %389 = vmatprep.subr.bf16.mxu0 0
  %390 = vmatpush1.bf16.msra.mxu0 0
  %391 = vmatprep.subr.bf16.mxu0 0
  %392 = vmatpush1.bf16.msra.mxu0 0
  %393 = vmatprep.subr.bf16.mxu0 0
  %394 = vmatpush1.bf16.msra.mxu0 0
  %395 = vmatprep.mubr.bf16.mxu0 0
  %396 = vmatmul.mubr.bf16.gmra.mrb[0].mxu0 %v134
  %v397 = vpop.f32.mrb[0].mxu0
  %v398 = vadd.f32 0.0, %v397
  %v399 = vpop.f32.mrb[0].mxu0
  %v400 = vadd.f32 0.0, %v399
  %v401 = vpop.f32.mrb[0].mxu0
  %v402 = vpop.f32.mrb[0].mxu0
  %403 = vdwg.mxu0
  %404 = vmatprep.subr.bf16.mxu0 %v318
  %405 = vmatpush1.bf16.msra.mxu0 %v317
  %406 = vmatprep.subr.bf16.mxu0 %v322
  %407 = vmatpush1.bf16.msra.mxu0 %v321
  %408 = vmatprep.subr.bf16.mxu0 %v326
  %409 = vmatpush1.bf16.msra.mxu0 %v325
  %410 = vmatprep.subr.bf16.mxu0 %v330
  %411 = vmatpush1.bf16.msra.mxu0 %v329
  %412 = vmatprep.subr.bf16.mxu0 %v361
  %413 = vmatpush1.bf16.msra.mxu0 %v358
  %414 = vmatprep.subr.bf16.mxu0 0
  %415 = vmatpush1.bf16.msra.mxu0 0
  %416 = vmatprep.subr.bf16.mxu0 0
  %417 = vmatpush1.bf16.msra.mxu0 0
  %418 = vmatprep.subr.bf16.mxu0 0
  %419 = vmatpush1.bf16.msra.mxu0 0
  %420 = vmatprep.subr.bf16.mxu0 0
  %421 = vmatpush1.bf16.msra.mxu0 0
  %422 = vmatprep.subr.bf16.mxu0 0
  %423 = vmatpush1.bf16.msra.mxu0 0
  %424 = vmatprep.subr.bf16.mxu0 0
  %425 = vmatpush1.bf16.msra.mxu0 0
  %426 = vmatprep.subr.bf16.mxu0 0
  %427 = vmatpush1.bf16.msra.mxu0 0
  %428 = vmatprep.subr.bf16.mxu0 0
  %429 = vmatpush1.bf16.msra.mxu0 0
  %430 = vmatprep.subr.bf16.mxu0 0
  %431 = vmatpush1.bf16.msra.mxu0 0
  %432 = vmatprep.subr.bf16.mxu0 0
  %433 = vmatpush1.bf16.msra.mxu0 0
  %434 = vmatprep.subr.bf16.mxu0 0
  %435 = vmatpush1.bf16.msra.mxu0 0
  %436 = vmatprep.mubr.bf16.mxu0 0
  %437 = vmatmul.mubr.bf16.gmra.mrb[0].mxu0 %v134
  %v438 = vpop.f32.mrb[0].mxu0
  %v439 = vadd.f32 0.0, %v438
  %v440 = vpop.f32.mrb[0].mxu0
  %v441 = vadd.f32 0.0, %v440
  %v442 = vpop.f32.mrb[0].mxu0
  %v443 = vpop.f32.mrb[0].mxu0
  %444 = vdwg.mxu0
  %s445 = scalar_lea.vmem %s0, 320
  %v446 = vld [vmem:[%s445] sm:$0xff]
  %v447 = vld [vmem:[%s445 + $0x8] sm:$0xff]
  %v448 = vld [vmem:[%s445 + $0x10] sm:$0xff]
  %v449 = vld [vmem:[%s445 + $0x18] sm:$0xff]
  %v450 = vld [vmem:[%s445 + $0x20] sm:$0xff]
  %v451 = vld [vmem:[%s445 + $0x28] sm:$0xff]
  %v452 = vld [vmem:[%s445 + $0x30] sm:$0xff]
  %v453 = vld [vmem:[%s445 + $0x38] sm:$0xff]
  %v454 = vld [vmem:[%s445 + $0x40] sm:$0xff]
  %v455 = vld [vmem:[%s445 + $0x48] sm:$0xff]
  %v456 = vld [vmem:[%s445 + $0x50] sm:$0xff]
  %v457 = vld [vmem:[%s445 + $0x58] sm:$0xff]
  %v458 = vld [vmem:[%s445 + $0x60] sm:$0xff]
  %v459 = vld [vmem:[%s445 + $0x68] sm:$0xff]
  %v460 = vld [vmem:[%s445 + $0x70] sm:$0xff]
  %v461 = vld [vmem:[%s445 + $0x78] sm:$0xff]
  %v462 = vld [vmem:[%s445 + $0x80] sm:$0xff]
  %v463 = vld [vmem:[%s445 + $0x88] sm:$0xff]
  %v464 = vld [vmem:[%s445 + $0x90] sm:$0x33]
  %v465 = vld [vmem:[%s445 + $0x98] sm:$0x33]
  %v486 = vunpack.c.l.b16 %v446
  %v487 = vunpack.c.h.b16 %v446
  %v488 = vunpack.c.l.b16 %v447
  %v489 = vunpack.c.h.b16 %v447
  %v490 = vunpack.c.l.b16 %v448
  %v491 = vunpack.c.h.b16 %v448
  %v492 = vunpack.c.l.b16 %v449
  %v493 = vunpack.c.h.b16 %v449
  %v494 = vunpack.c.l.b16 %v450
  %v495 = vunpack.c.h.b16 %v450
  %v496 = vunpack.c.l.b16 %v451
  %v497 = vunpack.c.h.b16 %v451
  %v498 = vunpack.c.l.b16 %v452
  %v499 = vunpack.c.h.b16 %v452
  %v500 = vunpack.c.l.b16 %v453
  %v501 = vunpack.c.h.b16 %v453
  %v502 = vunpack.c.l.b16 %v454
  %v503 = vunpack.c.h.b16 %v454
  %v504 = vunpack.c.l.b16 %v455
  %v505 = vunpack.c.h.b16 %v455
  %v506 = vunpack.c.l.b16 %v456
  %v507 = vunpack.c.h.b16 %v456
  %v508 = vunpack.c.l.b16 %v457
  %v509 = vunpack.c.h.b16 %v457
  %v510 = vunpack.c.l.b16 %v458
  %v511 = vunpack.c.h.b16 %v458
  %v512 = vunpack.c.l.b16 %v459
  %v513 = vunpack.c.h.b16 %v459
  %v514 = vunpack.c.l.b16 %v460
  %v515 = vunpack.c.h.b16 %v460
  %v516 = vunpack.c.l.b16 %v461
  %v517 = vunpack.c.h.b16 %v461
  %v518 = vunpack.c.l.b16 %v462
  %v519 = vunpack.c.h.b16 %v462
  %v520 = vunpack.c.l.b16 %v463
  %v521 = vunpack.c.h.b16 %v463
  %v522 = vunpack.c.l.b16 %v464
  %v523 = vunpack.c.h.b16 %v464
  %v524 = vunpack.c.l.b16 %v465
  %v525 = vunpack.c.h.b16 %v465
  %v526 = vpack.c.b16 %v490, %v486
  %v527 = vpack.c.b16 %v491, %v487
  %v528 = vpack.c.b16 %v492, %v488
  %v529 = vpack.c.b16 %v493, %v489
  %v530 = vpack.c.b16 %v498, %v494
  %v531 = vpack.c.b16 %v499, %v495
  %v532 = vpack.c.b16 %v500, %v496
  %v533 = vpack.c.b16 %v501, %v497
  %v534 = vpack.c.b16 %v506, %v502
  %v535 = vpack.c.b16 %v507, %v503
  %v536 = vpack.c.b16 %v508, %v504
  %v537 = vpack.c.b16 %v509, %v505
  %v538 = vpack.c.b16 %v514, %v510
  %v539 = vpack.c.b16 %v515, %v511
  %v540 = vpack.c.b16 %v516, %v512
  %v541 = vpack.c.b16 %v517, %v513
  %v542 = vpack.c.b16 %v522, %v518
  %v543 = vpack.c.b16 %v523, %v519
  %v544 = vpack.c.b16 %v524, %v520
  %v545 = vpack.c.b16 %v525, %v521
  %v563 = vand.u32 %v542, %v139
  %v566 = vand.u32 %v543, %v139
  %v569 = vand.u32 %v544, %v139
  %v572 = vand.u32 %v545, %v139
  %574 = vmatprep.subr.bf16.mxu0 %v527
  %575 = vmatpush1.bf16.msra.mxu0 %v526
  %576 = vmatprep.subr.bf16.mxu0 %v531
  %577 = vmatpush1.bf16.msra.mxu0 %v530
  %578 = vmatprep.subr.bf16.mxu0 %v535
  %579 = vmatpush1.bf16.msra.mxu0 %v534
  %580 = vmatprep.subr.bf16.mxu0 %v539
  %581 = vmatpush1.bf16.msra.mxu0 %v538
  %582 = vmatprep.subr.bf16.mxu0 %v566
  %583 = vmatpush1.bf16.msra.mxu0 %v563
  %584 = vmatprep.subr.bf16.mxu0 0
  %585 = vmatpush1.bf16.msra.mxu0 0
  %586 = vmatprep.subr.bf16.mxu0 0
  %587 = vmatpush1.bf16.msra.mxu0 0
  %588 = vmatprep.subr.bf16.mxu0 0
  %589 = vmatpush1.bf16.msra.mxu0 0
  %590 = vmatprep.subr.bf16.mxu0 0
  %591 = vmatpush1.bf16.msra.mxu0 0
  %592 = vmatprep.subr.bf16.mxu0 0
  %593 = vmatpush1.bf16.msra.mxu0 0
  %594 = vmatprep.subr.bf16.mxu0 0
  %595 = vmatpush1.bf16.msra.mxu0 0
  %596 = vmatprep.subr.bf16.mxu0 0
  %597 = vmatpush1.bf16.msra.mxu0 0
  %598 = vmatprep.subr.bf16.mxu0 0
  %599 = vmatpush1.bf16.msra.mxu0 0
  %600 = vmatprep.subr.bf16.mxu0 0
  %601 = vmatpush1.bf16.msra.mxu0 0
  %602 = vmatprep.subr.bf16.mxu0 0
  %603 = vmatpush1.bf16.msra.mxu0 0
  %604 = vmatprep.subr.bf16.mxu0 0
  %605 = vmatpush1.bf16.msra.mxu0 0
  %606 = vmatprep.mubr.bf16.mxu0 0
  %607 = vmatmul.mubr.bf16.gmra.mrb[0].mxu0 %v134
  %v608 = vpop.f32.mrb[0].mxu0
  %v609 = vadd.f32 0.0, %v608
  %v610 = vpop.f32.mrb[0].mxu0
  %v611 = vadd.f32 0.0, %v610
  %v612 = vpop.f32.mrb[0].mxu0
  %v613 = vpop.f32.mrb[0].mxu0
  %614 = vdwg.mxu0
  %615 = vmatprep.subr.bf16.mxu0 %v529
  %616 = vmatpush1.bf16.msra.mxu0 %v528
  %617 = vmatprep.subr.bf16.mxu0 %v533
  %618 = vmatpush1.bf16.msra.mxu0 %v532
  %619 = vmatprep.subr.bf16.mxu0 %v537
  %620 = vmatpush1.bf16.msra.mxu0 %v536
  %621 = vmatprep.subr.bf16.mxu0 %v541
  %622 = vmatpush1.bf16.msra.mxu0 %v540
  %623 = vmatprep.subr.bf16.mxu0 %v572
  %624 = vmatpush1.bf16.msra.mxu0 %v569
  %625 = vmatprep.subr.bf16.mxu0 0
  %626 = vmatpush1.bf16.msra.mxu0 0
  %627 = vmatprep.subr.bf16.mxu0 0
  %628 = vmatpush1.bf16.msra.mxu0 0
  %629 = vmatprep.subr.bf16.mxu0 0
  %630 = vmatpush1.bf16.msra.mxu0 0
  %631 = vmatprep.subr.bf16.mxu0 0
  %632 = vmatpush1.bf16.msra.mxu0 0
  %633 = vmatprep.subr.bf16.mxu0 0
  %634 = vmatpush1.bf16.msra.mxu0 0
  %635 = vmatprep.subr.bf16.mxu0 0
  %636 = vmatpush1.bf16.msra.mxu0 0
  %637 = vmatprep.subr.bf16.mxu0 0
  %638 = vmatpush1.bf16.msra.mxu0 0
  %639 = vmatprep.subr.bf16.mxu0 0
  %640 = vmatpush1.bf16.msra.mxu0 0
  %641 = vmatprep.subr.bf16.mxu0 0
  %642 = vmatpush1.bf16.msra.mxu0 0
  %643 = vmatprep.subr.bf16.mxu0 0
  %644 = vmatpush1.bf16.msra.mxu0 0
  %645 = vmatprep.subr.bf16.mxu0 0
  %646 = vmatpush1.bf16.msra.mxu0 0
  %647 = vmatprep.mubr.bf16.mxu0 0
  %648 = vmatmul.mubr.bf16.gmra.mrb[0].mxu0 %v134
  %v649 = vpop.f32.mrb[0].mxu0
  %v650 = vadd.f32 0.0, %v649
  %v651 = vpop.f32.mrb[0].mxu0
  %v652 = vadd.f32 0.0, %v651
  %v653 = vpop.f32.mrb[0].mxu0
  %v654 = vpop.f32.mrb[0].mxu0
  %655 = vdwg.mxu0
  %s656 = scalar_lea.vmem %s0, 480
  %v657 = vld [vmem:[%s656] sm:$0xff]
  %v658 = vld [vmem:[%s656 + $0x8] sm:$0xff]
  %v659 = vld [vmem:[%s656 + $0x10] sm:$0xff]
  %v660 = vld [vmem:[%s656 + $0x18] sm:$0xff]
  %v661 = vld [vmem:[%s656 + $0x20] sm:$0xff]
  %v662 = vld [vmem:[%s656 + $0x28] sm:$0xff]
  %v663 = vld [vmem:[%s656 + $0x30] sm:$0xff]
  %v664 = vld [vmem:[%s656 + $0x38] sm:$0xff]
  %v665 = vld [vmem:[%s656 + $0x40] sm:$0xff]
  %v666 = vld [vmem:[%s656 + $0x48] sm:$0xff]
  %v667 = vld [vmem:[%s656 + $0x50] sm:$0xff]
  %v668 = vld [vmem:[%s656 + $0x58] sm:$0xff]
  %v669 = vld [vmem:[%s656 + $0x60] sm:$0xff]
  %v670 = vld [vmem:[%s656 + $0x68] sm:$0xff]
  %v671 = vld [vmem:[%s656 + $0x70] sm:$0xff]
  %v672 = vld [vmem:[%s656 + $0x78] sm:$0xff]
  %v673 = vld [vmem:[%s656 + $0x80] sm:$0xff]
  %v674 = vld [vmem:[%s656 + $0x88] sm:$0xff]
  %v675 = vld [vmem:[%s656 + $0x90] sm:$0x33]
  %v676 = vld [vmem:[%s656 + $0x98] sm:$0x33]
  %v697 = vunpack.c.l.b16 %v657
  %v698 = vunpack.c.h.b16 %v657
  %v699 = vunpack.c.l.b16 %v658
  %v700 = vunpack.c.h.b16 %v658
  %v701 = vunpack.c.l.b16 %v659
  %v702 = vunpack.c.h.b16 %v659
  %v703 = vunpack.c.l.b16 %v660
  %v704 = vunpack.c.h.b16 %v660
  %v705 = vunpack.c.l.b16 %v661
  %v706 = vunpack.c.h.b16 %v661
  %v707 = vunpack.c.l.b16 %v662
  %v708 = vunpack.c.h.b16 %v662
  %v709 = vunpack.c.l.b16 %v663
  %v710 = vunpack.c.h.b16 %v663
  %v711 = vunpack.c.l.b16 %v664
  %v712 = vunpack.c.h.b16 %v664
  %v713 = vunpack.c.l.b16 %v665
  %v714 = vunpack.c.h.b16 %v665
  %v715 = vunpack.c.l.b16 %v666
  %v716 = vunpack.c.h.b16 %v666
  %v717 = vunpack.c.l.b16 %v667
  %v718 = vunpack.c.h.b16 %v667
  %v719 = vunpack.c.l.b16 %v668
  %v720 = vunpack.c.h.b16 %v668
  %v721 = vunpack.c.l.b16 %v669
  %v722 = vunpack.c.h.b16 %v669
  %v723 = vunpack.c.l.b16 %v670
  %v724 = vunpack.c.h.b16 %v670
  %v725 = vunpack.c.l.b16 %v671
  %v726 = vunpack.c.h.b16 %v671
  %v727 = vunpack.c.l.b16 %v672
  %v728 = vunpack.c.h.b16 %v672
  %v729 = vunpack.c.l.b16 %v673
  %v730 = vunpack.c.h.b16 %v673
  %v731 = vunpack.c.l.b16 %v674
  %v732 = vunpack.c.h.b16 %v674
  %v733 = vunpack.c.l.b16 %v675
  %v734 = vunpack.c.h.b16 %v675
  %v735 = vunpack.c.l.b16 %v676
  %v736 = vunpack.c.h.b16 %v676
  %v737 = vpack.c.b16 %v701, %v697
  %v738 = vpack.c.b16 %v702, %v698
  %v739 = vpack.c.b16 %v703, %v699
  %v740 = vpack.c.b16 %v704, %v700
  %v741 = vpack.c.b16 %v709, %v705
  %v742 = vpack.c.b16 %v710, %v706
  %v743 = vpack.c.b16 %v711, %v707
  %v744 = vpack.c.b16 %v712, %v708
  %v745 = vpack.c.b16 %v717, %v713
  %v746 = vpack.c.b16 %v718, %v714
  %v747 = vpack.c.b16 %v719, %v715
  %v748 = vpack.c.b16 %v720, %v716
  %v749 = vpack.c.b16 %v725, %v721
  %v750 = vpack.c.b16 %v726, %v722
  %v751 = vpack.c.b16 %v727, %v723
  %v752 = vpack.c.b16 %v728, %v724
  %v753 = vpack.c.b16 %v733, %v729
  %v754 = vpack.c.b16 %v734, %v730
  %v755 = vpack.c.b16 %v735, %v731
  %v756 = vpack.c.b16 %v736, %v732
  %v774 = vand.u32 %v753, %v139
  %v777 = vand.u32 %v754, %v139
  %v780 = vand.u32 %v755, %v139
  %v783 = vand.u32 %v756, %v139
  %785 = vmatprep.subr.bf16.mxu0 %v738
  %786 = vmatpush1.bf16.msra.mxu0 %v737
  %787 = vmatprep.subr.bf16.mxu0 %v742
  %788 = vmatpush1.bf16.msra.mxu0 %v741
  %789 = vmatprep.subr.bf16.mxu0 %v746
  %790 = vmatpush1.bf16.msra.mxu0 %v745
  %791 = vmatprep.subr.bf16.mxu0 %v750
  %792 = vmatpush1.bf16.msra.mxu0 %v749
  %793 = vmatprep.subr.bf16.mxu0 %v777
  %794 = vmatpush1.bf16.msra.mxu0 %v774
  %795 = vmatprep.subr.bf16.mxu0 0
  %796 = vmatpush1.bf16.msra.mxu0 0
  %797 = vmatprep.subr.bf16.mxu0 0
  %798 = vmatpush1.bf16.msra.mxu0 0
  %799 = vmatprep.subr.bf16.mxu0 0
  %800 = vmatpush1.bf16.msra.mxu0 0
  %801 = vmatprep.subr.bf16.mxu0 0
  %802 = vmatpush1.bf16.msra.mxu0 0
  %803 = vmatprep.subr.bf16.mxu0 0
  %804 = vmatpush1.bf16.msra.mxu0 0
  %805 = vmatprep.subr.bf16.mxu0 0
  %806 = vmatpush1.bf16.msra.mxu0 0
  %807 = vmatprep.subr.bf16.mxu0 0
  %808 = vmatpush1.bf16.msra.mxu0 0
  %809 = vmatprep.subr.bf16.mxu0 0
  %810 = vmatpush1.bf16.msra.mxu0 0
  %811 = vmatprep.subr.bf16.mxu0 0
  %812 = vmatpush1.bf16.msra.mxu0 0
  %813 = vmatprep.subr.bf16.mxu0 0
  %814 = vmatpush1.bf16.msra.mxu0 0
  %815 = vmatprep.subr.bf16.mxu0 0
  %816 = vmatpush1.bf16.msra.mxu0 0
  %817 = vmatprep.mubr.bf16.mxu0 0
  %818 = vmatmul.mubr.bf16.gmra.mrb[0].mxu0 %v134
  %v819 = vpop.f32.mrb[0].mxu0
  %v820 = vadd.f32 0.0, %v819
  %v821 = vpop.f32.mrb[0].mxu0
  %v822 = vadd.f32 0.0, %v821
  %v823 = vpop.f32.mrb[0].mxu0
  %v824 = vpop.f32.mrb[0].mxu0
  %825 = vdwg.mxu0
  %826 = vmatprep.subr.bf16.mxu0 %v740
  %827 = vmatpush1.bf16.msra.mxu0 %v739
  %828 = vmatprep.subr.bf16.mxu0 %v744
  %829 = vmatpush1.bf16.msra.mxu0 %v743
  %830 = vmatprep.subr.bf16.mxu0 %v748
  %831 = vmatpush1.bf16.msra.mxu0 %v747
  %832 = vmatprep.subr.bf16.mxu0 %v752
  %833 = vmatpush1.bf16.msra.mxu0 %v751
  %834 = vmatprep.subr.bf16.mxu0 %v783
  %835 = vmatpush1.bf16.msra.mxu0 %v780
  %836 = vmatprep.subr.bf16.mxu0 0
  %837 = vmatpush1.bf16.msra.mxu0 0
  %838 = vmatprep.subr.bf16.mxu0 0
  %839 = vmatpush1.bf16.msra.mxu0 0
  %840 = vmatprep.subr.bf16.mxu0 0
  %841 = vmatpush1.bf16.msra.mxu0 0
  %842 = vmatprep.subr.bf16.mxu0 0
  %843 = vmatpush1.bf16.msra.mxu0 0
  %844 = vmatprep.subr.bf16.mxu0 0
  %845 = vmatpush1.bf16.msra.mxu0 0
  %846 = vmatprep.subr.bf16.mxu0 0
  %847 = vmatpush1.bf16.msra.mxu0 0
  %848 = vmatprep.subr.bf16.mxu0 0
  %849 = vmatpush1.bf16.msra.mxu0 0
  %850 = vmatprep.subr.bf16.mxu0 0
  %851 = vmatpush1.bf16.msra.mxu0 0
  %852 = vmatprep.subr.bf16.mxu0 0
  %853 = vmatpush1.bf16.msra.mxu0 0
  %854 = vmatprep.subr.bf16.mxu0 0
  %855 = vmatpush1.bf16.msra.mxu0 0
  %856 = vmatprep.subr.bf16.mxu0 0
  %857 = vmatpush1.bf16.msra.mxu0 0
  %858 = vmatprep.mubr.bf16.mxu0 0
  %859 = vmatmul.mubr.bf16.gmra.mrb[0].mxu0 %v134
  %v860 = vpop.f32.mrb[0].mxu0
  %v861 = vadd.f32 0.0, %v860
  %v862 = vpop.f32.mrb[0].mxu0
  %v863 = vadd.f32 0.0, %v862
  %v864 = vpop.f32.mrb[0].mxu0
  %v865 = vpop.f32.mrb[0].mxu0
  %866 = vdwg.mxu0
  %v867 = vmax.f32 %v187, %v398
  %v868 = vmax.f32 %v189, %v400
  %v869 = vmax.f32 %v228, %v439
  %v870 = vmax.f32 %v230, %v441
  %v871 = vmax.f32 %v609, %v820
  %v872 = vmax.f32 %v611, %v822
  %v873 = vmax.f32 %v650, %v861
  %v874 = vmax.f32 %v652, %v863
  %v875 = vmax.f32 %v867, %v871
  %v876 = vmax.f32 %v868, %v872
  %v877 = vmax.f32 %v869, %v873
  %v878 = vmax.f32 %v870, %v874
  %v879 = vld [vmem:[%s2] sm:$0x3f]
  %881 = vset.pattern.permute.xlu0 0
  %882 = vperm.xlu0 %881, %v879
  %v883 = vpop.permute.xlu0 %882
  %v885 = vadd.f32 %v875, %v883
  %v886 = vadd.f32 %v876, %v883
  %v887 = vadd.f32 %v877, %v883
  %v888 = vadd.f32 %v878, %v883
  %v889 = vpack.c.bf16 %v885, %v885
  %v890 = vpack.c.bf16 %v886, %v886
  %v891 = vpack.c.bf16 %v887, %v887
  %v892 = vpack.c.bf16 %v888, %v888
  %v897 = vunpack.c.l.b16 %v889
  %v898 = vunpack.c.l.b16 %v890
  %v899 = vunpack.c.l.b16 %v891
  %v900 = vunpack.c.l.b16 %v892
  %v901 = vpack.c.b16 %v898, %v897
  %v902 = vpack.c.b16 %v900, %v899
  %905 = vst [vmem:[%s3] sm:$0x77] %v901
  %vm906 = vcmask 1042432
  %vm907 = vcmask 63492
  %vm908 = vmor %vm907, %vm906
  %909 = vst.msk [vmem:[%s3 + $0x8] sm:$0x77] %vm908, %v902
  // Predicated region
  $region14: #{lenet5_forward.3} parent=0 // pred_check
    _
  $region15: #{lenet5_forward.3} parent=0 // pred_check_branch
    %911 = sbr.rel (0) target = $region17
  $region16: #{lenet5_forward.3} parent=0 // pred_region
    _
  $region17: #{lenet5_forward.3} parent=0 // pred_fallthru
    _
  // Predicated region
  $region18: #{lenet5_forward.3} parent=0 // pred_check
    _
  $region19: #{lenet5_forward.3} parent=0 // pred_check_branch
    %913 = sbr.rel (0) target = $region21
  $region20: #{lenet5_forward.3} parent=0 // pred_region
    _
  $region21: #{lenet5_forward.3} parent=0 // pred_fallthru
    _

// kernel: lenet5_forward.4
$region0: #{lenet5_forward.4}
  #allocation0 [shape = 'u32[]', space=smem, size = 0x4, offset = 0x4, fixed_abs, tag = 'smem constant byte address 0x4 - core index']
  #allocation1 [shape = 'u32[144,128]{1,0:T(1,128)}', space=vmem, size = 0x12000, scoped, tag = 'internal scratch']
  %s0 = inlined_call_operand.vmem [shape: bf16[4,150,50], index: 0, kind: input, shape index: {}]
  %s1 = inlined_call_operand.vmem [shape: bf16[16,150], index: 1, kind: input, shape index: {}]
  %s2 = inlined_call_operand.vmem [shape: f32[16,1], index: 2, kind: input, shape index: {}]
  %s3 = inlined_call_operand.vmem [shape: bf16[16,50], index: 3, kind: output, shape index: {}]
  %s4 = sld [smem:[#allocation0]]
  $region22: #{lenet5_forward.4} parent=0
    _
  %s6 = ssub.s32 1, %s4
  %s7 = scalar_select 0, %s6, %s4
  // Predicated region
  $region2: #{lenet5_forward.4} parent=0 // pred_check
    _
  $region3: #{lenet5_forward.4} parent=0 // pred_check_branch
    %9 = sbr.rel (0) target = $region5
  $region4: #{lenet5_forward.4} parent=0 // pred_region
    _
  $region5: #{lenet5_forward.4} parent=0 // pred_fallthru
    _
  // Predicated region
  $region6: #{lenet5_forward.4} parent=0 // pred_check
    _
  $region7: #{lenet5_forward.4} parent=0 // pred_check_branch
    %11 = sbr.rel (0) target = $region9
  $region8: #{lenet5_forward.4} parent=0 // pred_region
    _
  $region9: #{lenet5_forward.4} parent=0 // pred_fallthru
    _
  // Predicated region
  $region10: #{lenet5_forward.4} parent=0 // pred_check
    _
  $region11: #{lenet5_forward.4} parent=0 // pred_check_branch
    %13 = sbr.rel (0) target = $region13
  $region12: #{lenet5_forward.4} parent=0 // pred_region
    _
  $region13: #{lenet5_forward.4} parent=0 // pred_fallthru
    _
  %v15 = vld [vmem:[%s1] sm:$0xff]
  %v16 = vld [vmem:[%s1 + $0x8] sm:$0xff]
  %v17 = vld [vmem:[%s0] sm:$0xf]
  %v18 = vld [vmem:[%s0 + $0x4] sm:$0xf]
  %v19 = vld [vmem:[%s0 + $0x8] sm:$0xf]
  %v20 = vld [vmem:[%s0 + $0xc] sm:$0xf]
  %v21 = vld [vmem:[%s0 + $0x10] sm:$0xf]
  %v22 = vld [vmem:[%s0 + $0x14] sm:$0xf]
  %v23 = vld [vmem:[%s0 + $0x18] sm:$0xf]
  %v24 = vld [vmem:[%s0 + $0x1c] sm:$0xf]
  %v25 = vld [vmem:[%s0 + $0x20] sm:$0xf]
  %v26 = vld [vmem:[%s0 + $0x24] sm:$0xf]
  %v27 = vld [vmem:[%s0 + $0x28] sm:$0xf]
  %v28 = vld [vmem:[%s0 + $0x2c] sm:$0xf]
  %v29 = vld [vmem:[%s0 + $0x30] sm:$0xf]
  %v30 = vld [vmem:[%s0 + $0x34] sm:$0xf]
  %v31 = vld [vmem:[%s0 + $0x38] sm:$0xf]
  %v32 = vld [vmem:[%s0 + $0x3c] sm:$0xf]
  %v33 = vld [vmem:[%s0 + $0x40] sm:$0xf]
  %v34 = vld [vmem:[%s0 + $0x44] sm:$0xf]
  %v35 = vld [vmem:[%s0 + $0x48] sm:$0x7]
  %v38 = vunpack.c.l.b16 %v15
  %v39 = vunpack.c.h.b16 %v15
  %v40 = vunpack.c.l.b16 %v16
  %v41 = vunpack.c.h.b16 %v16
  %v42 = vpack.c.b16 %v40, %v38
  %v43 = vpack.c.b16 %v41, %v39
  %v64 = vunpack.c.l.b16 %v17
  %v65 = vunpack.c.l.b16 %v18
  %v66 = vunpack.c.l.b16 %v19
  %v67 = vunpack.c.l.b16 %v20
  %v68 = vunpack.c.l.b16 %v21
  %v69 = vunpack.c.l.b16 %v22
  %v70 = vunpack.c.l.b16 %v23
  %v71 = vunpack.c.l.b16 %v24
  %v72 = vunpack.c.l.b16 %v25
  %v73 = vunpack.c.l.b16 %v26
  %v74 = vunpack.c.l.b16 %v27
  %v75 = vunpack.c.l.b16 %v28
  %v76 = vunpack.c.l.b16 %v29
  %v77 = vunpack.c.l.b16 %v30
  %v78 = vunpack.c.l.b16 %v31
  %v79 = vunpack.c.l.b16 %v32
  %v80 = vunpack.c.l.b16 %v33
  %v81 = vunpack.c.l.b16 %v34
  %v82 = vunpack.c.l.b16 %v35
  %v83 = vpack.c.b16 %v65, %v64
  %v84 = vpack.c.b16 %v67, %v66
  %v85 = vpack.c.b16 %v69, %v68
  %v86 = vpack.c.b16 %v71, %v70
  %v87 = vpack.c.b16 %v73, %v72
  %v88 = vpack.c.b16 %v75, %v74
  %v89 = vpack.c.b16 %v77, %v76
  %v90 = vpack.c.b16 %v79, %v78
  %v91 = vpack.c.b16 %v81, %v80
  %v92 = vpack.c.b16 %v82, %v82
  %vm102 = vcmask 179200
  %v104 = vsel %vm102, %v43, 0
  %vm106 = vcmask 1042432
  %v108 = vsel %vm106, %v92, 0
  %110 = vmatprep.subr.bf16.mxu0 0
  %111 = vmatpush1.bf16.msra.mxu0 %v83
  %112 = vmatprep.subr.bf16.mxu0 0
  %113 = vmatpush1.bf16.msra.mxu0 %v84
  %114 = vmatprep.subr.bf16.mxu0 0
  %115 = vmatpush1.bf16.msra.mxu0 %v85
  %116 = vmatprep.subr.bf16.mxu0 0
  %117 = vmatpush1.bf16.msra.mxu0 %v86
  %118 = vmatprep.subr.bf16.mxu0 0
  %119 = vmatpush1.bf16.msra.mxu0 %v87
  %120 = vmatprep.subr.bf16.mxu0 0
  %121 = vmatpush1.bf16.msra.mxu0 %v88
  %122 = vmatprep.subr.bf16.mxu0 0
  %123 = vmatpush1.bf16.msra.mxu0 %v89
  %124 = vmatprep.subr.bf16.mxu0 0
  %125 = vmatpush1.bf16.msra.mxu0 %v90
  %126 = vmatprep.subr.bf16.mxu0 0
  %127 = vmatpush1.bf16.msra.mxu0 %v91
  %128 = vmatprep.subr.bf16.mxu0 0
  %129 = vmatpush1.bf16.msra.mxu0 %v108
  %130 = vmatprep.subr.bf16.mxu0 0
  %131 = vmatpush1.bf16.msra.mxu0 0
  %132 = vmatprep.subr.bf16.mxu0 0
  %133 = vmatpush1.bf16.msra.mxu0 0
  %134 = vmatprep.subr.bf16.mxu0 0
  %135 = vmatpush1.bf16.msra.mxu0 0
  %136 = vmatprep.subr.bf16.mxu0 0
  %137 = vmatpush1.bf16.msra.mxu0 0
  %138 = vmatprep.subr.bf16.mxu0 0
  %139 = vmatpush1.bf16.msra.mxu0 0
  %140 = vmatprep.subr.bf16.mxu0 0
  %141 = vmatpush1.bf16.msra.mxu0 0
  %142 = vmatprep.mubr.bf16.mxu0 %v104
  %143 = vmatmul.mubr.bf16.gmra.mrb[0].mxu0 %v42
  %v144 = vpop.f32.mrb[0].mxu0
  %v145 = vadd.f32 0.0, %v144
  %v146 = vpop.f32.mrb[0].mxu0
  %v147 = vpop.f32.mrb[0].mxu0
  %v148 = vadd.f32 0.0, %v147
  %v149 = vpop.f32.mrb[0].mxu0
  %150 = vdwg.mxu0
  %s151 = scalar_lea.vmem %s0, 76
  %v152 = vld [vmem:[%s151] sm:$0xf]
  %v153 = vld [vmem:[%s151 + $0x4] sm:$0xf]
  %v154 = vld [vmem:[%s151 + $0x8] sm:$0xf]
  %v155 = vld [vmem:[%s151 + $0xc] sm:$0xf]
  %v156 = vld [vmem:[%s151 + $0x10] sm:$0xf]
  %v157 = vld [vmem:[%s151 + $0x14] sm:$0xf]
  %v158 = vld [vmem:[%s151 + $0x18] sm:$0xf]
  %v159 = vld [vmem:[%s151 + $0x1c] sm:$0xf]
  %v160 = vld [vmem:[%s151 + $0x20] sm:$0xf]
  %v161 = vld [vmem:[%s151 + $0x24] sm:$0xf]
  %v162 = vld [vmem:[%s151 + $0x28] sm:$0xf]
  %v163 = vld [vmem:[%s151 + $0x2c] sm:$0xf]
  %v164 = vld [vmem:[%s151 + $0x30] sm:$0xf]
  %v165 = vld [vmem:[%s151 + $0x34] sm:$0xf]
  %v166 = vld [vmem:[%s151 + $0x38] sm:$0xf]
  %v167 = vld [vmem:[%s151 + $0x3c] sm:$0xf]
  %v168 = vld [vmem:[%s151 + $0x40] sm:$0xf]
  %v169 = vld [vmem:[%s151 + $0x44] sm:$0xf]
  %v170 = vld [vmem:[%s151 + $0x48] sm:$0x7]
  %v190 = vunpack.c.l.b16 %v152
  %v191 = vunpack.c.l.b16 %v153
  %v192 = vunpack.c.l.b16 %v154
  %v193 = vunpack.c.l.b16 %v155
  %v194 = vunpack.c.l.b16 %v156
  %v195 = vunpack.c.l.b16 %v157
  %v196 = vunpack.c.l.b16 %v158
  %v197 = vunpack.c.l.b16 %v159
  %v198 = vunpack.c.l.b16 %v160
  %v199 = vunpack.c.l.b16 %v161
  %v200 = vunpack.c.l.b16 %v162
  %v201 = vunpack.c.l.b16 %v163
  %v202 = vunpack.c.l.b16 %v164
  %v203 = vunpack.c.l.b16 %v165
  %v204 = vunpack.c.l.b16 %v166
  %v205 = vunpack.c.l.b16 %v167
  %v206 = vunpack.c.l.b16 %v168
  %v207 = vunpack.c.l.b16 %v169
  %v208 = vunpack.c.l.b16 %v170
  %v209 = vpack.c.b16 %v191, %v190
  %v210 = vpack.c.b16 %v193, %v192
  %v211 = vpack.c.b16 %v195, %v194
  %v212 = vpack.c.b16 %v197, %v196
  %v213 = vpack.c.b16 %v199, %v198
  %v214 = vpack.c.b16 %v201, %v200
  %v215 = vpack.c.b16 %v203, %v202
  %v216 = vpack.c.b16 %v205, %v204
  %v217 = vpack.c.b16 %v207, %v206
  %v218 = vpack.c.b16 %v208, %v208
  %v229 = vsel %vm106, %v218, 0
  %231 = vmatprep.subr.bf16.mxu0 0
  %232 = vmatpush1.bf16.msra.mxu0 %v209
  %233 = vmatprep.subr.bf16.mxu0 0
  %234 = vmatpush1.bf16.msra.mxu0 %v210
  %235 = vmatprep.subr.bf16.mxu0 0
  %236 = vmatpush1.bf16.msra.mxu0 %v211
  %237 = vmatprep.subr.bf16.mxu0 0
  %238 = vmatpush1.bf16.msra.mxu0 %v212
  %239 = vmatprep.subr.bf16.mxu0 0
  %240 = vmatpush1.bf16.msra.mxu0 %v213
  %241 = vmatprep.subr.bf16.mxu0 0
  %242 = vmatpush1.bf16.msra.mxu0 %v214
  %243 = vmatprep.subr.bf16.mxu0 0
  %244 = vmatpush1.bf16.msra.mxu0 %v215
  %245 = vmatprep.subr.bf16.mxu0 0
  %246 = vmatpush1.bf16.msra.mxu0 %v216
  %247 = vmatprep.subr.bf16.mxu0 0
  %248 = vmatpush1.bf16.msra.mxu0 %v217
  %249 = vmatprep.subr.bf16.mxu0 0
  %250 = vmatpush1.bf16.msra.mxu0 %v229
  %251 = vmatprep.subr.bf16.mxu0 0
  %252 = vmatpush1.bf16.msra.mxu0 0
  %253 = vmatprep.subr.bf16.mxu0 0
  %254 = vmatpush1.bf16.msra.mxu0 0
  %255 = vmatprep.subr.bf16.mxu0 0
  %256 = vmatpush1.bf16.msra.mxu0 0
  %257 = vmatprep.subr.bf16.mxu0 0
  %258 = vmatpush1.bf16.msra.mxu0 0
  %259 = vmatprep.subr.bf16.mxu0 0
  %260 = vmatpush1.bf16.msra.mxu0 0
  %261 = vmatprep.subr.bf16.mxu0 0
  %262 = vmatpush1.bf16.msra.mxu0 0
  %263 = vmatprep.mubr.bf16.mxu0 %v104
  %264 = vmatmul.mubr.bf16.gmra.mrb[0].mxu0 %v42
  %v265 = vpop.f32.mrb[0].mxu0
  %v266 = vadd.f32 0.0, %v265
  %v267 = vpop.f32.mrb[0].mxu0
  %v268 = vpop.f32.mrb[0].mxu0
  %v269 = vadd.f32 0.0, %v268
  %v270 = vpop.f32.mrb[0].mxu0
  %271 = vdwg.mxu0
  %s272 = scalar_lea.vmem %s0, 152
  %v273 = vld [vmem:[%s272] sm:$0xf]
  %v274 = vld [vmem:[%s272 + $0x4] sm:$0xf]
  %v275 = vld [vmem:[%s272 + $0x8] sm:$0xf]
  %v276 = vld [vmem:[%s272 + $0xc] sm:$0xf]
  %v277 = vld [vmem:[%s272 + $0x10] sm:$0xf]
  %v278 = vld [vmem:[%s272 + $0x14] sm:$0xf]
  %v279 = vld [vmem:[%s272 + $0x18] sm:$0xf]
  %v280 = vld [vmem:[%s272 + $0x1c] sm:$0xf]
  %v281 = vld [vmem:[%s272 + $0x20] sm:$0xf]
  %v282 = vld [vmem:[%s272 + $0x24] sm:$0xf]
  %v283 = vld [vmem:[%s272 + $0x28] sm:$0xf]
  %v284 = vld [vmem:[%s272 + $0x2c] sm:$0xf]
  %v285 = vld [vmem:[%s272 + $0x30] sm:$0xf]
  %v286 = vld [vmem:[%s272 + $0x34] sm:$0xf]
  %v287 = vld [vmem:[%s272 + $0x38] sm:$0xf]
  %v288 = vld [vmem:[%s272 + $0x3c] sm:$0xf]
  %v289 = vld [vmem:[%s272 + $0x40] sm:$0xf]
  %v290 = vld [vmem:[%s272 + $0x44] sm:$0xf]
  %v291 = vld [vmem:[%s272 + $0x48] sm:$0x7]
  %v311 = vunpack.c.l.b16 %v273
  %v312 = vunpack.c.l.b16 %v274
  %v313 = vunpack.c.l.b16 %v275
  %v314 = vunpack.c.l.b16 %v276
  %v315 = vunpack.c.l.b16 %v277
  %v316 = vunpack.c.l.b16 %v278
  %v317 = vunpack.c.l.b16 %v279
  %v318 = vunpack.c.l.b16 %v280
  %v319 = vunpack.c.l.b16 %v281
  %v320 = vunpack.c.l.b16 %v282
  %v321 = vunpack.c.l.b16 %v283
  %v322 = vunpack.c.l.b16 %v284
  %v323 = vunpack.c.l.b16 %v285
  %v324 = vunpack.c.l.b16 %v286
  %v325 = vunpack.c.l.b16 %v287
  %v326 = vunpack.c.l.b16 %v288
  %v327 = vunpack.c.l.b16 %v289
  %v328 = vunpack.c.l.b16 %v290
  %v329 = vunpack.c.l.b16 %v291
  %v330 = vpack.c.b16 %v312, %v311
  %v331 = vpack.c.b16 %v314, %v313
  %v332 = vpack.c.b16 %v316, %v315
  %v333 = vpack.c.b16 %v318, %v317
  %v334 = vpack.c.b16 %v320, %v319
  %v335 = vpack.c.b16 %v322, %v321
  %v336 = vpack.c.b16 %v324, %v323
  %v337 = vpack.c.b16 %v326, %v325
  %v338 = vpack.c.b16 %v328, %v327
  %v339 = vpack.c.b16 %v329, %v329
  %v350 = vsel %vm106, %v339, 0
  %352 = vmatprep.subr.bf16.mxu0 0
  %353 = vmatpush1.bf16.msra.mxu0 %v330
  %354 = vmatprep.subr.bf16.mxu0 0
  %355 = vmatpush1.bf16.msra.mxu0 %v331
  %356 = vmatprep.subr.bf16.mxu0 0
  %357 = vmatpush1.bf16.msra.mxu0 %v332
  %358 = vmatprep.subr.bf16.mxu0 0
  %359 = vmatpush1.bf16.msra.mxu0 %v333
  %360 = vmatprep.subr.bf16.mxu0 0
  %361 = vmatpush1.bf16.msra.mxu0 %v334
  %362 = vmatprep.subr.bf16.mxu0 0
  %363 = vmatpush1.bf16.msra.mxu0 %v335
  %364 = vmatprep.subr.bf16.mxu0 0
  %365 = vmatpush1.bf16.msra.mxu0 %v336
  %366 = vmatprep.subr.bf16.mxu0 0
  %367 = vmatpush1.bf16.msra.mxu0 %v337
  %368 = vmatprep.subr.bf16.mxu0 0
  %369 = vmatpush1.bf16.msra.mxu0 %v338
  %370 = vmatprep.subr.bf16.mxu0 0
  %371 = vmatpush1.bf16.msra.mxu0 %v350
  %372 = vmatprep.subr.bf16.mxu0 0
  %373 = vmatpush1.bf16.msra.mxu0 0
  %374 = vmatprep.subr.bf16.mxu0 0
  %375 = vmatpush1.bf16.msra.mxu0 0
  %376 = vmatprep.subr.bf16.mxu0 0
  %377 = vmatpush1.bf16.msra.mxu0 0
  %378 = vmatprep.subr.bf16.mxu0 0
  %379 = vmatpush1.bf16.msra.mxu0 0
  %380 = vmatprep.subr.bf16.mxu0 0
  %381 = vmatpush1.bf16.msra.mxu0 0
  %382 = vmatprep.subr.bf16.mxu0 0
  %383 = vmatpush1.bf16.msra.mxu0 0
  %384 = vmatprep.mubr.bf16.mxu0 %v104
  %385 = vmatmul.mubr.bf16.gmra.mrb[0].mxu0 %v42
  %v386 = vpop.f32.mrb[0].mxu0
  %v387 = vadd.f32 0.0, %v386
  %v388 = vpop.f32.mrb[0].mxu0
  %v389 = vpop.f32.mrb[0].mxu0
  %v390 = vadd.f32 0.0, %v389
  %v391 = vpop.f32.mrb[0].mxu0
  %392 = vdwg.mxu0
  %s393 = scalar_lea.vmem %s0, 228
  %v394 = vld [vmem:[%s393] sm:$0xf]
  %v395 = vld [vmem:[%s393 + $0x4] sm:$0xf]
  %v396 = vld [vmem:[%s393 + $0x8] sm:$0xf]
  %v397 = vld [vmem:[%s393 + $0xc] sm:$0xf]
  %v398 = vld [vmem:[%s393 + $0x10] sm:$0xf]
  %v399 = vld [vmem:[%s393 + $0x14] sm:$0xf]
  %v400 = vld [vmem:[%s393 + $0x18] sm:$0xf]
  %v401 = vld [vmem:[%s393 + $0x1c] sm:$0xf]
  %v402 = vld [vmem:[%s393 + $0x20] sm:$0xf]
  %v403 = vld [vmem:[%s393 + $0x24] sm:$0xf]
  %v404 = vld [vmem:[%s393 + $0x28] sm:$0xf]
  %v405 = vld [vmem:[%s393 + $0x2c] sm:$0xf]
  %v406 = vld [vmem:[%s393 + $0x30] sm:$0xf]
  %v407 = vld [vmem:[%s393 + $0x34] sm:$0xf]
  %v408 = vld [vmem:[%s393 + $0x38] sm:$0xf]
  %v409 = vld [vmem:[%s393 + $0x3c] sm:$0xf]
  %v410 = vld [vmem:[%s393 + $0x40] sm:$0xf]
  %v411 = vld [vmem:[%s393 + $0x44] sm:$0xf]
  %v412 = vld [vmem:[%s393 + $0x48] sm:$0x7]
  %v432 = vunpack.c.l.b16 %v394
  %v433 = vunpack.c.l.b16 %v395
  %v434 = vunpack.c.l.b16 %v396
  %v435 = vunpack.c.l.b16 %v397
  %v436 = vunpack.c.l.b16 %v398
  %v437 = vunpack.c.l.b16 %v399
  %v438 = vunpack.c.l.b16 %v400
  %v439 = vunpack.c.l.b16 %v401
  %v440 = vunpack.c.l.b16 %v402
  %v441 = vunpack.c.l.b16 %v403
  %v442 = vunpack.c.l.b16 %v404
  %v443 = vunpack.c.l.b16 %v405
  %v444 = vunpack.c.l.b16 %v406
  %v445 = vunpack.c.l.b16 %v407
  %v446 = vunpack.c.l.b16 %v408
  %v447 = vunpack.c.l.b16 %v409
  %v448 = vunpack.c.l.b16 %v410
  %v449 = vunpack.c.l.b16 %v411
  %v450 = vunpack.c.l.b16 %v412
  %v451 = vpack.c.b16 %v433, %v432
  %v452 = vpack.c.b16 %v435, %v434
  %v453 = vpack.c.b16 %v437, %v436
  %v454 = vpack.c.b16 %v439, %v438
  %v455 = vpack.c.b16 %v441, %v440
  %v456 = vpack.c.b16 %v443, %v442
  %v457 = vpack.c.b16 %v445, %v444
  %v458 = vpack.c.b16 %v447, %v446
  %v459 = vpack.c.b16 %v449, %v448
  %v460 = vpack.c.b16 %v450, %v450
  %v471 = vsel %vm106, %v460, 0
  %473 = vmatprep.subr.bf16.mxu0 0
  %474 = vmatpush1.bf16.msra.mxu0 %v451
  %475 = vmatprep.subr.bf16.mxu0 0
  %476 = vmatpush1.bf16.msra.mxu0 %v452
  %477 = vmatprep.subr.bf16.mxu0 0
  %478 = vmatpush1.bf16.msra.mxu0 %v453
  %479 = vmatprep.subr.bf16.mxu0 0
  %480 = vmatpush1.bf16.msra.mxu0 %v454
  %481 = vmatprep.subr.bf16.mxu0 0
  %482 = vmatpush1.bf16.msra.mxu0 %v455
  %483 = vmatprep.subr.bf16.mxu0 0
  %484 = vmatpush1.bf16.msra.mxu0 %v456
  %485 = vmatprep.subr.bf16.mxu0 0
  %486 = vmatpush1.bf16.msra.mxu0 %v457
  %487 = vmatprep.subr.bf16.mxu0 0
  %488 = vmatpush1.bf16.msra.mxu0 %v458
  %489 = vmatprep.subr.bf16.mxu0 0
  %490 = vmatpush1.bf16.msra.mxu0 %v459
  %491 = vmatprep.subr.bf16.mxu0 0
  %492 = vmatpush1.bf16.msra.mxu0 %v471
  %493 = vmatprep.subr.bf16.mxu0 0
  %494 = vmatpush1.bf16.msra.mxu0 0
  %495 = vmatprep.subr.bf16.mxu0 0
  %496 = vmatpush1.bf16.msra.mxu0 0
  %497 = vmatprep.subr.bf16.mxu0 0
  %498 = vmatpush1.bf16.msra.mxu0 0
  %499 = vmatprep.subr.bf16.mxu0 0
  %500 = vmatpush1.bf16.msra.mxu0 0
  %501 = vmatprep.subr.bf16.mxu0 0
  %502 = vmatpush1.bf16.msra.mxu0 0
  %503 = vmatprep.subr.bf16.mxu0 0
  %504 = vmatpush1.bf16.msra.mxu0 0
  %505 = vmatprep.mubr.bf16.mxu0 %v104
  %506 = vmatmul.mubr.bf16.gmra.mrb[0].mxu0 %v42
  %v507 = vpop.f32.mrb[0].mxu0
  %v508 = vadd.f32 0.0, %v507
  %v509 = vpop.f32.mrb[0].mxu0
  %v510 = vpop.f32.mrb[0].mxu0
  %v511 = vadd.f32 0.0, %v510
  %v512 = vpop.f32.mrb[0].mxu0
  %513 = vdwg.mxu0
  %v514 = vmax.f32 %v145, %v266
  %v515 = vmax.f32 %v148, %v269
  %v516 = vmax.f32 %v387, %v508
  %v517 = vmax.f32 %v390, %v511
  %v518 = vmax.f32 %v514, %v516
  %v519 = vmax.f32 %v515, %v517
  %v520 = vld [vmem:[%s2] sm:$0xff]
  %v521 = vld [vmem:[%s2 + $0x8] sm:$0xff]
  %523 = vset.pattern.permute.xlu0 0
  %524 = vperm.xlu0 %523, %v520
  %v525 = vpop.permute.xlu0 %524
  %528 = vset.pattern.permute.xlu0 0
  %529 = vperm.xlu0 %528, %v521
  %v530 = vpop.permute.xlu0 %529
  %v532 = vadd.f32 %v518, %v525
  %v533 = vadd.f32 %v519, %v530
  %v534 = vpack.c.bf16 %v533, %v532
  %v536 = vunpack.c.l.b16 %v534
  %v537 = vunpack.c.h.b16 %v534
  %v538 = vpack.c.b16 %v536, %v536
  %v539 = vpack.c.b16 %v537, %v537
  %vm542 = vcmask 404480
  %543 = vst.msk [vmem:[%s3] sm:$0xf] %vm542, %v538
  %544 = vst.msk [vmem:[%s3 + $0x4] sm:$0xf] %vm542, %v539
  // Predicated region
  $region14: #{lenet5_forward.4} parent=0 // pred_check
    _
  $region15: #{lenet5_forward.4} parent=0 // pred_check_branch
    %546 = sbr.rel (0) target = $region17
  $region16: #{lenet5_forward.4} parent=0 // pred_region
    _
  $region17: #{lenet5_forward.4} parent=0 // pred_fallthru
    _
  // Predicated region
  $region18: #{lenet5_forward.4} parent=0 // pred_check
    _
  $region19: #{lenet5_forward.4} parent=0 // pred_check_branch
    %548 = sbr.rel (0) target = $region21
  $region20: #{lenet5_forward.4} parent=0 // pred_region
    _
  $region21: #{lenet5_forward.4} parent=0 // pred_fallthru
    _

// kernel: lenet5_forward.5
$region0: #{lenet5_forward.5}
  #allocation0 [shape = 'u32[]', space=smem, size = 0x4, offset = 0x4, fixed_abs, tag = 'smem constant byte address 0x4 - core index']
  #allocation1 [shape = 'u32[144,128]{1,0:T(1,128)}', space=vmem, size = 0x12000, scoped, tag = 'internal scratch']
  %s0 = inlined_call_operand.vmem [shape: bf16[400,2], index: 0, kind: input, shape index: {}]
  %s1 = inlined_call_operand.vmem [shape: bf16[120,400], index: 1, kind: input, shape index: {}]
  %s2 = inlined_call_operand.vmem [shape: f32[120,1], index: 2, kind: input, shape index: {}]
  %s3 = inlined_call_operand.vmem [shape: bf16[84,120], index: 3, kind: input, shape index: {}]
  %s4 = inlined_call_operand.vmem [shape: f32[84,1], index: 4, kind: input, shape index: {}]
  %s5 = inlined_call_operand.vmem [shape: bf16[16,84], index: 5, kind: input, shape index: {}]
  %s6 = inlined_call_operand.vmem [shape: f32[16,1], index: 6, kind: input, shape index: {}]
  %s7 = inlined_call_operand.vmem [shape: f32[16,2], index: 7, kind: output, shape index: {}]
  %s8 = sld [smem:[#allocation0]]
  $region38: #{lenet5_forward.5} parent=0
    _
  %s10 = ssub.s32 1, %s8
  %s11 = scalar_select 0, %s10, %s8
  // Predicated region
  $region2: #{lenet5_forward.5} parent=0 // pred_check
    _
  $region3: #{lenet5_forward.5} parent=0 // pred_check_branch
    %13 = sbr.rel (0) target = $region5
  $region4: #{lenet5_forward.5} parent=0 // pred_region
    _
  $region5: #{lenet5_forward.5} parent=0 // pred_fallthru
    _
  // Predicated region
  $region6: #{lenet5_forward.5} parent=0 // pred_check
    _
  $region7: #{lenet5_forward.5} parent=0 // pred_check_branch
    %15 = sbr.rel (0) target = $region9
  $region8: #{lenet5_forward.5} parent=0 // pred_region
    _
  $region9: #{lenet5_forward.5} parent=0 // pred_fallthru
    _
  // Predicated region
  $region10: #{lenet5_forward.5} parent=0 // pred_check
    _
  $region11: #{lenet5_forward.5} parent=0 // pred_check_branch
    %17 = sbr.rel (0) target = $region13
  $region12: #{lenet5_forward.5} parent=0 // pred_region
    _
  $region13: #{lenet5_forward.5} parent=0 // pred_fallthru
    _
  // Predicated region
  $region14: #{lenet5_forward.5} parent=0 // pred_check
    _
  $region15: #{lenet5_forward.5} parent=0 // pred_check_branch
    %19 = sbr.rel (0) target = $region17
  $region16: #{lenet5_forward.5} parent=0 // pred_region
    _
  $region17: #{lenet5_forward.5} parent=0 // pred_fallthru
    _
  // Predicated region
  $region18: #{lenet5_forward.5} parent=0 // pred_check
    _
  $region19: #{lenet5_forward.5} parent=0 // pred_check_branch
    %21 = sbr.rel (0) target = $region21
  $region20: #{lenet5_forward.5} parent=0 // pred_region
    _
  $region21: #{lenet5_forward.5} parent=0 // pred_fallthru
    _
  // Predicated region
  $region22: #{lenet5_forward.5} parent=0 // pred_check
    _
  $region23: #{lenet5_forward.5} parent=0 // pred_check_branch
    %23 = sbr.rel (0) target = $region25
  $region24: #{lenet5_forward.5} parent=0 // pred_region
    _
  $region25: #{lenet5_forward.5} parent=0 // pred_fallthru
    _
  // Predicated region
  $region26: #{lenet5_forward.5} parent=0 // pred_check
    _
  $region27: #{lenet5_forward.5} parent=0 // pred_check_branch
    %25 = sbr.rel (0) target = $region29
  $region28: #{lenet5_forward.5} parent=0 // pred_region
    _
  $region29: #{lenet5_forward.5} parent=0 // pred_fallthru
    _
  %v27 = vld [vmem:[%s1] sm:$0xff]
  %v28 = vld [vmem:[%s1 + $0x8] sm:$0xff]
  %v29 = vld [vmem:[%s1 + $0x10] sm:$0xff]
  %v30 = vld [vmem:[%s1 + $0x18] sm:$0xff]
  %v31 = vld [vmem:[%s1 + $0x20] sm:$0xff]
  %v32 = vld [vmem:[%s1 + $0x28] sm:$0xff]
  %v33 = vld [vmem:[%s1 + $0x30] sm:$0xff]
  %v34 = vld [vmem:[%s1 + $0x38] sm:$0xff]
  %v35 = vld [vmem:[%s1 + $0x40] sm:$0xff]
  %v36 = vld [vmem:[%s1 + $0x48] sm:$0xff]
  %v37 = vld [vmem:[%s1 + $0x50] sm:$0xff]
  %v38 = vld [vmem:[%s1 + $0x58] sm:$0xff]
  %v39 = vld [vmem:[%s1 + $0x60] sm:$0xff]
  %v40 = vld [vmem:[%s1 + $0x68] sm:$0xff]
  %v41 = vld [vmem:[%s1 + $0x70] sm:$0xff]
  %v42 = vld [vmem:[%s1 + $0x78] sm:$0xff]
  %v43 = vld [vmem:[%s1 + $0x80] sm:$0xff]
  %v44 = vld [vmem:[%s1 + $0x88] sm:$0xff]
  %v45 = vld [vmem:[%s1 + $0x90] sm:$0xff]
  %v46 = vld [vmem:[%s1 + $0x98] sm:$0xff]
  %v47 = vld [vmem:[%s1 + $0xa0] sm:$0xff]
  %v48 = vld [vmem:[%s1 + $0xa8] sm:$0xff]
  %v49 = vld [vmem:[%s1 + $0xb0] sm:$0xff]
  %v50 = vld [vmem:[%s1 + $0xb8] sm:$0xff]
  %v51 = vld [vmem:[%s1 + $0xc0] sm:$0xff]
  %v52 = vld [vmem:[%s1 + $0xc8] sm:$0xff]
  %v53 = vld [vmem:[%s1 + $0xd0] sm:$0xff]
  %v54 = vld [vmem:[%s1 + $0xd8] sm:$0xff]
  %v55 = vld [vmem:[%s1 + $0xe0] sm:$0xff]
  %v56 = vld [vmem:[%s1 + $0xe8] sm:$0xff]
  %v57 = vld [vmem:[%s0] sm:$0xf]
  %v58 = vld [vmem:[%s0 + $0x4] sm:$0xf]
  %v59 = vld [vmem:[%s0 + $0x8] sm:$0xf]
  %v60 = vld [vmem:[%s0 + $0xc] sm:$0xf]
  %v61 = vld [vmem:[%s0 + $0x10] sm:$0xf]
  %v62 = vld [vmem:[%s0 + $0x14] sm:$0xf]
  %v63 = vld [vmem:[%s0 + $0x18] sm:$0xf]
  %v64 = vld [vmem:[%s0 + $0x1c] sm:$0xf]
  %v65 = vld [vmem:[%s0 + $0x20] sm:$0xf]
  %v66 = vld [vmem:[%s0 + $0x24] sm:$0xf]
  %v67 = vld [vmem:[%s0 + $0x28] sm:$0xf]
  %v68 = vld [vmem:[%s0 + $0x2c] sm:$0xf]
  %v69 = vld [vmem:[%s0 + $0x30] sm:$0xf]
  %v70 = vld [vmem:[%s0 + $0x34] sm:$0xf]
  %v71 = vld [vmem:[%s0 + $0x38] sm:$0xf]
  %v72 = vld [vmem:[%s0 + $0x3c] sm:$0xf]
  %v73 = vld [vmem:[%s0 + $0x40] sm:$0xf]
  %v74 = vld [vmem:[%s0 + $0x44] sm:$0xf]
  %v75 = vld [vmem:[%s0 + $0x48] sm:$0xf]
  %v76 = vld [vmem:[%s0 + $0x4c] sm:$0xf]
  %v77 = vld [vmem:[%s0 + $0x50] sm:$0xf]
  %v78 = vld [vmem:[%s0 + $0x54] sm:$0xf]
  %v79 = vld [vmem:[%s0 + $0x58] sm:$0xf]
  %v80 = vld [vmem:[%s0 + $0x5c] sm:$0xf]
  %v81 = vld [vmem:[%s0 + $0x60] sm:$0xf]
  %v82 = vld [vmem:[%s0 + $0x64] sm:$0xf]
  %v83 = vld [vmem:[%s0 + $0x68] sm:$0xf]
  %v84 = vld [vmem:[%s0 + $0x6c] sm:$0xf]
  %v85 = vld [vmem:[%s0 + $0x70] sm:$0xf]
  %v86 = vld [vmem:[%s0 + $0x74] sm:$0xf]
  %v87 = vld [vmem:[%s0 + $0x78] sm:$0xf]
  %v88 = vld [vmem:[%s0 + $0x7c] sm:$0xf]
  %v89 = vld [vmem:[%s0 + $0x80] sm:$0xf]
  %v90 = vld [vmem:[%s0 + $0x84] sm:$0xf]
  %v91 = vld [vmem:[%s0 + $0x88] sm:$0xf]
  %v92 = vld [vmem:[%s0 + $0x8c] sm:$0xf]
  %v93 = vld [vmem:[%s0 + $0x90] sm:$0xf]
  %v94 = vld [vmem:[%s0 + $0x94] sm:$0xf]
  %v95 = vld [vmem:[%s0 + $0x98] sm:$0xf]
  %v96 = vld [vmem:[%s0 + $0x9c] sm:$0xf]
  %v97 = vld [vmem:[%s0 + $0xa0] sm:$0xf]
  %v98 = vld [vmem:[%s0 + $0xa4] sm:$0xf]
  %v99 = vld [vmem:[%s0 + $0xa8] sm:$0xf]
  %v100 = vld [vmem:[%s0 + $0xac] sm:$0xf]
  %v101 = vld [vmem:[%s0 + $0xb0] sm:$0xf]
  %v102 = vld [vmem:[%s0 + $0xb4] sm:$0xf]
  %v103 = vld [vmem:[%s0 + $0xb8] sm:$0xf]
  %v104 = vld [vmem:[%s0 + $0xbc] sm:$0xf]
  %v105 = vld [vmem:[%s0 + $0xc0] sm:$0xf]
  %v106 = vld [vmem:[%s0 + $0xc4] sm:$0xf]
  %v107 = vld [vmem:[%s2] sm:$0xff]
  %v108 = vld [vmem:[%s2 + $0x8] sm:$0xff]
  %v109 = vld [vmem:[%s2 + $0x10] sm:$0xff]
  %v110 = vld [vmem:[%s2 + $0x18] sm:$0xff]
  %v111 = vld [vmem:[%s2 + $0x20] sm:$0xff]
  %v112 = vld [vmem:[%s2 + $0x28] sm:$0xff]
  %v113 = vld [vmem:[%s2 + $0x30] sm:$0xff]
  %v114 = vld [vmem:[%s2 + $0x38] sm:$0xff]
  %v115 = vld [vmem:[%s2 + $0x40] sm:$0xff]
  %v116 = vld [vmem:[%s2 + $0x48] sm:$0xff]
  %v117 = vld [vmem:[%s2 + $0x50] sm:$0xff]
  %v118 = vld [vmem:[%s2 + $0x58] sm:$0xff]
  %v119 = vld [vmem:[%s2 + $0x60] sm:$0xff]
  %v120 = vld [vmem:[%s2 + $0x68] sm:$0xff]
  %v121 = vld [vmem:[%s2 + $0x70] sm:$0xff]
  %123 = vset.pattern.permute.xlu0 0
  %124 = vperm.xlu0 %123, %v107
  %v125 = vpop.permute.xlu0 %124
  %128 = vset.pattern.permute.xlu0 0
  %129 = vperm.xlu0 %128, %v108
  %v130 = vpop.permute.xlu0 %129
  %133 = vset.pattern.permute.xlu0 0
  %134 = vperm.xlu0 %133, %v109
  %v135 = vpop.permute.xlu0 %134
  %138 = vset.pattern.permute.xlu0 0
  %139 = vperm.xlu0 %138, %v110
  %v140 = vpop.permute.xlu0 %139
  %143 = vset.pattern.permute.xlu0 0
  %144 = vperm.xlu0 %143, %v111
  %v145 = vpop.permute.xlu0 %144
  %148 = vset.pattern.permute.xlu0 0
  %149 = vperm.xlu0 %148, %v112
  %v150 = vpop.permute.xlu0 %149
  %153 = vset.pattern.permute.xlu0 0
  %154 = vperm.xlu0 %153, %v113
  %v155 = vpop.permute.xlu0 %154
  %158 = vset.pattern.permute.xlu0 0
  %159 = vperm.xlu0 %158, %v114
  %v160 = vpop.permute.xlu0 %159
  %163 = vset.pattern.permute.xlu0 0
  %164 = vperm.xlu0 %163, %v115
  %v165 = vpop.permute.xlu0 %164
  %168 = vset.pattern.permute.xlu0 0
  %169 = vperm.xlu0 %168, %v116
  %v170 = vpop.permute.xlu0 %169
  %173 = vset.pattern.permute.xlu0 0
  %174 = vperm.xlu0 %173, %v117
  %v175 = vpop.permute.xlu0 %174
  %178 = vset.pattern.permute.xlu0 0
  %179 = vperm.xlu0 %178, %v118
  %v180 = vpop.permute.xlu0 %179
  %183 = vset.pattern.permute.xlu0 0
  %184 = vperm.xlu0 %183, %v119
  %v185 = vpop.permute.xlu0 %184
  %188 = vset.pattern.permute.xlu0 0
  %189 = vperm.xlu0 %188, %v120
  %v190 = vpop.permute.xlu0 %189
  %193 = vset.pattern.permute.xlu0 0
  %194 = vperm.xlu0 %193, %v121
  %v195 = vpop.permute.xlu0 %194
  %v227 = vunpack.c.l.b16 %v27
  %v228 = vunpack.c.h.b16 %v27
  %v229 = vunpack.c.l.b16 %v28
  %v230 = vunpack.c.h.b16 %v28
  %v231 = vunpack.c.l.b16 %v29
  %v232 = vunpack.c.h.b16 %v29
  %v233 = vunpack.c.l.b16 %v30
  %v234 = vunpack.c.h.b16 %v30
  %v235 = vunpack.c.l.b16 %v31
  %v236 = vunpack.c.h.b16 %v31
  %v237 = vunpack.c.l.b16 %v32
  %v238 = vunpack.c.h.b16 %v32
  %v239 = vunpack.c.l.b16 %v33
  %v240 = vunpack.c.h.b16 %v33
  %v241 = vunpack.c.l.b16 %v34
  %v242 = vunpack.c.h.b16 %v34
  %v243 = vunpack.c.l.b16 %v35
  %v244 = vunpack.c.h.b16 %v35
  %v245 = vunpack.c.l.b16 %v36
  %v246 = vunpack.c.h.b16 %v36
  %v247 = vunpack.c.l.b16 %v37
  %v248 = vunpack.c.h.b16 %v37
  %v249 = vunpack.c.l.b16 %v38
  %v250 = vunpack.c.h.b16 %v38
  %v251 = vunpack.c.l.b16 %v39
  %v252 = vunpack.c.h.b16 %v39
  %v253 = vunpack.c.l.b16 %v40
  %v254 = vunpack.c.h.b16 %v40
  %v255 = vunpack.c.l.b16 %v41
  %v256 = vunpack.c.h.b16 %v41
  %v257 = vunpack.c.l.b16 %v42
  %v258 = vunpack.c.h.b16 %v42
  %v259 = vunpack.c.l.b16 %v43
  %v260 = vunpack.c.h.b16 %v43
  %v261 = vunpack.c.l.b16 %v44
  %v262 = vunpack.c.h.b16 %v44
  %v263 = vunpack.c.l.b16 %v45
  %v264 = vunpack.c.h.b16 %v45
  %v265 = vunpack.c.l.b16 %v46
  %v266 = vunpack.c.h.b16 %v46
  %v267 = vunpack.c.l.b16 %v47
  %v268 = vunpack.c.h.b16 %v47
  %v269 = vunpack.c.l.b16 %v48
  %v270 = vunpack.c.h.b16 %v48
  %v271 = vunpack.c.l.b16 %v49
  %v272 = vunpack.c.h.b16 %v49
  %v273 = vunpack.c.l.b16 %v50
  %v274 = vunpack.c.h.b16 %v50
  %v275 = vunpack.c.l.b16 %v51
  %v276 = vunpack.c.h.b16 %v51
  %v277 = vunpack.c.l.b16 %v52
  %v278 = vunpack.c.h.b16 %v52
  %v279 = vunpack.c.l.b16 %v53
  %v280 = vunpack.c.h.b16 %v53
  %v281 = vunpack.c.l.b16 %v54
  %v282 = vunpack.c.h.b16 %v54
  %v283 = vunpack.c.l.b16 %v55
  %v284 = vunpack.c.h.b16 %v55
  %v285 = vunpack.c.l.b16 %v56
  %v286 = vunpack.c.h.b16 %v56
  %v287 = vpack.c.b16 %v231, %v227
  %v288 = vpack.c.b16 %v232, %v228
  %v289 = vpack.c.b16 %v233, %v229
  %v290 = vpack.c.b16 %v234, %v230
  %v291 = vpack.c.b16 %v239, %v235
  %v292 = vpack.c.b16 %v240, %v236
  %v293 = vpack.c.b16 %v241, %v237
  %v294 = vpack.c.b16 %v242, %v238
  %v295 = vpack.c.b16 %v247, %v243
  %v296 = vpack.c.b16 %v248, %v244
  %v297 = vpack.c.b16 %v249, %v245
  %v298 = vpack.c.b16 %v250, %v246
  %v299 = vpack.c.b16 %v255, %v251
  %v300 = vpack.c.b16 %v256, %v252
  %v301 = vpack.c.b16 %v257, %v253
  %v302 = vpack.c.b16 %v258, %v254
  %v303 = vpack.c.b16 %v263, %v259
  %v304 = vpack.c.b16 %v264, %v260
  %v305 = vpack.c.b16 %v265, %v261
  %v306 = vpack.c.b16 %v266, %v262
  %v307 = vpack.c.b16 %v271, %v267
  %v308 = vpack.c.b16 %v272, %v268
  %v309 = vpack.c.b16 %v273, %v269
  %v310 = vpack.c.b16 %v274, %v270
  %v311 = vpack.c.b16 %v279, %v275
  %v312 = vpack.c.b16 %v280, %v276
  %v313 = vpack.c.b16 %v281, %v277
  %v314 = vpack.c.b16 %v282, %v278
  %v315 = vpack.c.b16 %v283, %v283
  %v316 = vpack.c.b16 %v284, %v284
  %v317 = vpack.c.b16 %v285, %v285
  %v318 = vpack.c.b16 %v286, %v286
  %v393 = vunpack.c.l.b16 %v57
  %v394 = vunpack.c.l.b16 %v58
  %v395 = vunpack.c.l.b16 %v59
  %v396 = vunpack.c.l.b16 %v60
  %v397 = vunpack.c.l.b16 %v61
  %v398 = vunpack.c.l.b16 %v62
  %v399 = vunpack.c.l.b16 %v63
  %v400 = vunpack.c.l.b16 %v64
  %v401 = vunpack.c.l.b16 %v65
  %v402 = vunpack.c.l.b16 %v66
  %v403 = vunpack.c.l.b16 %v67
  %v404 = vunpack.c.l.b16 %v68
  %v405 = vunpack.c.l.b16 %v69
  %v406 = vunpack.c.l.b16 %v70
  %v407 = vunpack.c.l.b16 %v71
  %v408 = vunpack.c.l.b16 %v72
  %v409 = vunpack.c.l.b16 %v73
  %v410 = vunpack.c.l.b16 %v74
  %v411 = vunpack.c.l.b16 %v75
  %v412 = vunpack.c.l.b16 %v76
  %v413 = vunpack.c.l.b16 %v77
  %v414 = vunpack.c.l.b16 %v78
  %v415 = vunpack.c.l.b16 %v79
  %v416 = vunpack.c.l.b16 %v80
  %v417 = vunpack.c.l.b16 %v81
  %v418 = vunpack.c.l.b16 %v82
  %v419 = vunpack.c.l.b16 %v83
  %v420 = vunpack.c.l.b16 %v84
  %v421 = vunpack.c.l.b16 %v85
  %v422 = vunpack.c.l.b16 %v86
  %v423 = vunpack.c.l.b16 %v87
  %v424 = vunpack.c.l.b16 %v88
  %v425 = vunpack.c.l.b16 %v89
  %v426 = vunpack.c.l.b16 %v90
  %v427 = vunpack.c.l.b16 %v91
  %v428 = vunpack.c.l.b16 %v92
  %v429 = vunpack.c.l.b16 %v93
  %v430 = vunpack.c.l.b16 %v94
  %v431 = vunpack.c.l.b16 %v95
  %v432 = vunpack.c.l.b16 %v96
  %v433 = vunpack.c.l.b16 %v97
  %v434 = vunpack.c.l.b16 %v98
  %v435 = vunpack.c.l.b16 %v99
  %v436 = vunpack.c.l.b16 %v100
  %v437 = vunpack.c.l.b16 %v101
  %v438 = vunpack.c.l.b16 %v102
  %v439 = vunpack.c.l.b16 %v103
  %v440 = vunpack.c.l.b16 %v104
  %v441 = vunpack.c.l.b16 %v105
  %v442 = vunpack.c.l.b16 %v106
  %v443 = vpack.c.b16 %v394, %v393
  %v444 = vpack.c.b16 %v396, %v395
  %v445 = vpack.c.b16 %v398, %v397
  %v446 = vpack.c.b16 %v400, %v399
  %v447 = vpack.c.b16 %v402, %v401
  %v448 = vpack.c.b16 %v404, %v403
  %v449 = vpack.c.b16 %v406, %v405
  %v450 = vpack.c.b16 %v408, %v407
  %v451 = vpack.c.b16 %v410, %v409
  %v452 = vpack.c.b16 %v412, %v411
  %v453 = vpack.c.b16 %v414, %v413
  %v454 = vpack.c.b16 %v416, %v415
  %v455 = vpack.c.b16 %v418, %v417
  %v456 = vpack.c.b16 %v420, %v419
  %v457 = vpack.c.b16 %v422, %v421
  %v458 = vpack.c.b16 %v424, %v423
  %v459 = vpack.c.b16 %v426, %v425
  %v460 = vpack.c.b16 %v428, %v427
  %v461 = vpack.c.b16 %v430, %v429
  %v462 = vpack.c.b16 %v432, %v431
  %v463 = vpack.c.b16 %v434, %v433
  %v464 = vpack.c.b16 %v436, %v435
  %v465 = vpack.c.b16 %v438, %v437
  %v466 = vpack.c.b16 %v440, %v439
  %v467 = vpack.c.b16 %v442, %v441
  %vm493 = vcmask 130048
  %v495 = vsel %vm493, %v290, 0
  %v498 = vsel %vm493, %v294, 0
  %v501 = vsel %vm493, %v298, 0
  %v504 = vsel %vm493, %v302, 0
  %v507 = vsel %vm493, %v306, 0
  %v510 = vsel %vm493, %v310, 0
  %v513 = vsel %vm493, %v314, 0
  %v516 = vsel %vm493, %v318, 0
  %518 = vmatprep.subr.bf16.mxu0 0
  %519 = vmatpush1.bf16.msra.mxu0 %v443
  %520 = vmatprep.subr.bf16.mxu0 0
  %521 = vmatpush1.bf16.msra.mxu0 %v444
  %522 = vmatprep.subr.bf16.mxu0 0
  %523 = vmatpush1.bf16.msra.mxu0 %v445
  %524 = vmatprep.subr.bf16.mxu0 0
  %525 = vmatpush1.bf16.msra.mxu0 %v446
  %526 = vmatprep.subr.bf16.mxu0 0
  %527 = vmatpush1.bf16.msra.mxu0 %v447
  %528 = vmatprep.subr.bf16.mxu0 0
  %529 = vmatpush1.bf16.msra.mxu0 %v448
  %530 = vmatprep.subr.bf16.mxu0 0
  %531 = vmatpush1.bf16.msra.mxu0 %v449
  %532 = vmatprep.subr.bf16.mxu0 0
  %533 = vmatpush1.bf16.msra.mxu0 %v450
  %534 = vmatprep.subr.bf16.mxu0 0
  %535 = vmatpush1.bf16.msra.mxu0 %v451
  %536 = vmatprep.subr.bf16.mxu0 0
  %537 = vmatpush1.bf16.msra.mxu0 %v452
  %538 = vmatprep.subr.bf16.mxu0 0
  %539 = vmatpush1.bf16.msra.mxu0 %v453
  %540 = vmatprep.subr.bf16.mxu0 0
  %541 = vmatpush1.bf16.msra.mxu0 %v454
  %542 = vmatprep.subr.bf16.mxu0 0
  %543 = vmatpush1.bf16.msra.mxu0 %v455
  %544 = vmatprep.subr.bf16.mxu0 0
  %545 = vmatpush1.bf16.msra.mxu0 %v456
  %546 = vmatprep.subr.bf16.mxu0 0
  %547 = vmatpush1.bf16.msra.mxu0 %v457
  %548 = vmatprep.subr.bf16.mxu0 0
  %549 = vmatpush1.bf16.msra.mxu0 %v458
  %550 = vmatprep.mubr.bf16.mxu0 %v288
  %551 = vmatmul.mubr.bf16.gmra.mrb[0].mxu0 %v287
  %v552 = vpop.f32.mrb[0].mxu0
  %v553 = vadd.f32 %v125, %v552
  %v554 = vpop.f32.mrb[0].mxu0
  %v555 = vpop.f32.mrb[0].mxu0
  %v556 = vadd.f32 %v130, %v555
  %v557 = vpop.f32.mrb[0].mxu0
  %558 = vmatprep.mubr.bf16.mxu0 %v292
  %559 = vmatmul.mubr.bf16.gmra.mrb[0].mxu0 %v291
  %v560 = vpop.f32.mrb[0].mxu0
  %v561 = vadd.f32 %v135, %v560
  %v562 = vpop.f32.mrb[0].mxu0
  %v563 = vpop.f32.mrb[0].mxu0
  %v564 = vadd.f32 %v140, %v563
  %v565 = vpop.f32.mrb[0].mxu0
  %566 = vmatprep.mubr.bf16.mxu0 %v296
  %567 = vmatmul.mubr.bf16.gmra.mrb[0].mxu0 %v295
  %v568 = vpop.f32.mrb[0].mxu0
  %v569 = vadd.f32 %v145, %v568
  %v570 = vpop.f32.mrb[0].mxu0
  %v571 = vpop.f32.mrb[0].mxu0
  %v572 = vadd.f32 %v150, %v571
  %v573 = vpop.f32.mrb[0].mxu0
  %574 = vmatprep.mubr.bf16.mxu0 %v300
  %575 = vmatmul.mubr.bf16.gmra.mrb[0].mxu0 %v299
  %v576 = vpop.f32.mrb[0].mxu0
  %v577 = vadd.f32 %v155, %v576
  %v578 = vpop.f32.mrb[0].mxu0
  %v579 = vpop.f32.mrb[0].mxu0
  %v580 = vadd.f32 %v160, %v579
  %v581 = vpop.f32.mrb[0].mxu0
  %582 = vmatprep.mubr.bf16.mxu0 %v304
  %583 = vmatmul.mubr.bf16.gmra.mrb[0].mxu0 %v303
  %v584 = vpop.f32.mrb[0].mxu0
  %v585 = vadd.f32 %v165, %v584
  %v586 = vpop.f32.mrb[0].mxu0
  %v587 = vpop.f32.mrb[0].mxu0
  %v588 = vadd.f32 %v170, %v587
  %v589 = vpop.f32.mrb[0].mxu0
  %590 = vmatprep.mubr.bf16.mxu0 %v308
  %591 = vmatmul.mubr.bf16.gmra.mrb[0].mxu0 %v307
  %v592 = vpop.f32.mrb[0].mxu0
  %v593 = vadd.f32 %v175, %v592
  %v594 = vpop.f32.mrb[0].mxu0
  %v595 = vpop.f32.mrb[0].mxu0
  %v596 = vadd.f32 %v180, %v595
  %v597 = vpop.f32.mrb[0].mxu0
  %598 = vmatprep.mubr.bf16.mxu0 %v312
  %599 = vmatmul.mubr.bf16.gmra.mrb[0].mxu0 %v311
  %v600 = vpop.f32.mrb[0].mxu0
  %v601 = vadd.f32 %v185, %v600
  %v602 = vpop.f32.mrb[0].mxu0
  %v603 = vpop.f32.mrb[0].mxu0
  %v604 = vadd.f32 %v190, %v603
  %v605 = vpop.f32.mrb[0].mxu0
  %606 = vmatprep.mubr.bf16.mxu0 %v316
  %607 = vmatmul.mubr.bf16.gmra.mrb[0].mxu0 %v315
  %v608 = vpop.f32.mrb[0].mxu0
  %v609 = vadd.f32 %v195, %v608
  %v610 = vpop.f32.mrb[0].mxu0
  %v611 = vpop.f32.mrb[0].mxu0
  %v612 = vpop.f32.mrb[0].mxu0
  %613 = vdwg.mxu0
  %614 = vmatprep.subr.bf16.mxu0 0
  %615 = vmatpush1.bf16.msra.mxu0 %v459
  %616 = vmatprep.subr.bf16.mxu0 0
  %617 = vmatpush1.bf16.msra.mxu0 %v460
  %618 = vmatprep.subr.bf16.mxu0 0
  %619 = vmatpush1.bf16.msra.mxu0 %v461
  %620 = vmatprep.subr.bf16.mxu0 0
  %621 = vmatpush1.bf16.msra.mxu0 %v462
  %622 = vmatprep.subr.bf16.mxu0 0
  %623 = vmatpush1.bf16.msra.mxu0 %v463
  %624 = vmatprep.subr.bf16.mxu0 0
  %625 = vmatpush1.bf16.msra.mxu0 %v464
  %626 = vmatprep.subr.bf16.mxu0 0
  %627 = vmatpush1.bf16.msra.mxu0 %v465
  %628 = vmatprep.subr.bf16.mxu0 0
  %629 = vmatpush1.bf16.msra.mxu0 %v466
  %630 = vmatprep.subr.bf16.mxu0 0
  %631 = vmatpush1.bf16.msra.mxu0 %v467
  %632 = vmatprep.subr.bf16.mxu0 0
  %633 = vmatpush1.bf16.msra.mxu0 0
  %634 = vmatprep.subr.bf16.mxu0 0
  %635 = vmatpush1.bf16.msra.mxu0 0
  %636 = vmatprep.subr.bf16.mxu0 0
  %637 = vmatpush1.bf16.msra.mxu0 0
  %638 = vmatprep.subr.bf16.mxu0 0
  %639 = vmatpush1.bf16.msra.mxu0 0
  %640 = vmatprep.subr.bf16.mxu0 0
  %641 = vmatpush1.bf16.msra.mxu0 0
  %642 = vmatprep.subr.bf16.mxu0 0
  %643 = vmatpush1.bf16.msra.mxu0 0
  %644 = vmatprep.subr.bf16.mxu0 0
  %645 = vmatpush1.bf16.msra.mxu0 0
  %646 = vmatprep.mubr.bf16.mxu0 %v495
  %647 = vmatmul.mubr.bf16.gmra.mrb[0].mxu0 %v289
  %v648 = vpop.f32.mrb[0].mxu0
  %v649 = vadd.f32 %v553, %v648
  %v650 = vpop.f32.mrb[0].mxu0
  %v651 = vpop.f32.mrb[0].mxu0
  %v652 = vadd.f32 %v556, %v651
  %v653 = vpop.f32.mrb[0].mxu0
  %654 = vmatprep.mubr.bf16.mxu0 %v498
  %655 = vmatmul.mubr.bf16.gmra.mrb[0].mxu0 %v293
  %v656 = vpop.f32.mrb[0].mxu0
  %v657 = vadd.f32 %v561, %v656
  %v658 = vpop.f32.mrb[0].mxu0
  %v659 = vpop.f32.mrb[0].mxu0
  %v660 = vadd.f32 %v564, %v659
  %v661 = vpop.f32.mrb[0].mxu0
  %662 = vmatprep.mubr.bf16.mxu0 %v501
  %663 = vmatmul.mubr.bf16.gmra.mrb[0].mxu0 %v297
  %v664 = vpop.f32.mrb[0].mxu0
  %v665 = vadd.f32 %v569, %v664
  %v666 = vpop.f32.mrb[0].mxu0
  %v667 = vpop.f32.mrb[0].mxu0
  %v668 = vadd.f32 %v572, %v667
  %v669 = vpop.f32.mrb[0].mxu0
  %670 = vmatprep.mubr.bf16.mxu0 %v504
  %671 = vmatmul.mubr.bf16.gmra.mrb[0].mxu0 %v301
  %v672 = vpop.f32.mrb[0].mxu0
  %v673 = vadd.f32 %v577, %v672
  %v674 = vpop.f32.mrb[0].mxu0
  %v675 = vpop.f32.mrb[0].mxu0
  %v676 = vadd.f32 %v580, %v675
  %v677 = vpop.f32.mrb[0].mxu0
  %678 = vmatprep.mubr.bf16.mxu0 %v507
  %679 = vmatmul.mubr.bf16.gmra.mrb[0].mxu0 %v305
  %v680 = vpop.f32.mrb[0].mxu0
  %v681 = vadd.f32 %v585, %v680
  %v682 = vpop.f32.mrb[0].mxu0
  %v683 = vpop.f32.mrb[0].mxu0
  %v684 = vadd.f32 %v588, %v683
  %v685 = vpop.f32.mrb[0].mxu0
  %686 = vmatprep.mubr.bf16.mxu0 %v510
  %687 = vmatmul.mubr.bf16.gmra.mrb[0].mxu0 %v309
  %v688 = vpop.f32.mrb[0].mxu0
  %v689 = vadd.f32 %v593, %v688
  %v690 = vpop.f32.mrb[0].mxu0
  %v691 = vpop.f32.mrb[0].mxu0
  %v692 = vadd.f32 %v596, %v691
  %v693 = vpop.f32.mrb[0].mxu0
  %694 = vmatprep.mubr.bf16.mxu0 %v513
  %695 = vmatmul.mubr.bf16.gmra.mrb[0].mxu0 %v313
  %v696 = vpop.f32.mrb[0].mxu0
  %v697 = vadd.f32 %v601, %v696
  %v698 = vpop.f32.mrb[0].mxu0
  %v699 = vpop.f32.mrb[0].mxu0
  %v700 = vadd.f32 %v604, %v699
  %v701 = vpop.f32.mrb[0].mxu0
  %702 = vmatprep.mubr.bf16.mxu0 %v516
  %703 = vmatmul.mubr.bf16.gmra.mrb[0].mxu0 %v317
  %v704 = vpop.f32.mrb[0].mxu0
  %v705 = vadd.f32 %v609, %v704
  %v706 = vpop.f32.mrb[0].mxu0
  %v707 = vpop.f32.mrb[0].mxu0
  %v708 = vpop.f32.mrb[0].mxu0
  %709 = vdwg.mxu0
  %v710 = vmax.f32 %v649, 0.0
  %v711 = vmax.f32 %v652, 0.0
  %v712 = vmax.f32 %v657, 0.0
  %v713 = vmax.f32 %v660, 0.0
  %v714 = vmax.f32 %v665, 0.0
  %v715 = vmax.f32 %v668, 0.0
  %v716 = vmax.f32 %v673, 0.0
  %v717 = vmax.f32 %v676, 0.0
  %v718 = vmax.f32 %v681, 0.0
  %v719 = vmax.f32 %v684, 0.0
  %v720 = vmax.f32 %v689, 0.0
  %v721 = vmax.f32 %v692, 0.0
  %v722 = vmax.f32 %v697, 0.0
  %v723 = vmax.f32 %v700, 0.0
  %v724 = vmax.f32 %v705, 0.0
  %v725 = vpack.c.bf16 %v711, %v710
  %v726 = vpack.c.bf16 %v713, %v712
  %v727 = vpack.c.bf16 %v715, %v714
  %v728 = vpack.c.bf16 %v717, %v716
  %v729 = vpack.c.bf16 %v719, %v718
  %v730 = vpack.c.bf16 %v721, %v720
  %v731 = vpack.c.bf16 %v723, %v722
  %v732 = vpack.c.bf16 %v724, %v724
  %v733 = vld [vmem:[%s3] sm:$0xf]
  %v734 = vld [vmem:[%s3 + $0x4] sm:$0xf]
  %v735 = vld [vmem:[%s3 + $0x8] sm:$0xf]
  %v736 = vld [vmem:[%s3 + $0xc] sm:$0xf]
  %v737 = vld [vmem:[%s3 + $0x10] sm:$0xf]
  %v738 = vld [vmem:[%s3 + $0x14] sm:$0xf]
  %v739 = vld [vmem:[%s3 + $0x18] sm:$0xf]
  %v740 = vld [vmem:[%s3 + $0x1c] sm:$0xf]
  %v741 = vld [vmem:[%s3 + $0x20] sm:$0xf]
  %v742 = vld [vmem:[%s3 + $0x24] sm:$0xf]
  %v743 = vld [vmem:[%s3 + $0x28] sm:$0x3]
  %v744 = vld [vmem:[%s4] sm:$0xff]
  %v745 = vld [vmem:[%s4 + $0x8] sm:$0xff]
  %v746 = vld [vmem:[%s4 + $0x10] sm:$0xff]
  %v747 = vld [vmem:[%s4 + $0x18] sm:$0xff]
  %v748 = vld [vmem:[%s4 + $0x20] sm:$0xff]
  %v749 = vld [vmem:[%s4 + $0x28] sm:$0xff]
  %v750 = vld [vmem:[%s4 + $0x30] sm:$0xff]
  %v751 = vld [vmem:[%s4 + $0x38] sm:$0xff]
  %v752 = vld [vmem:[%s4 + $0x40] sm:$0xff]
  %v753 = vld [vmem:[%s4 + $0x48] sm:$0xff]
  %v754 = vld [vmem:[%s4 + $0x50] sm:$0xf]
  %756 = vset.pattern.permute.xlu0 0
  %757 = vperm.xlu0 %756, %v744
  %v758 = vpop.permute.xlu0 %757
  %761 = vset.pattern.permute.xlu0 0
  %762 = vperm.xlu0 %761, %v745
  %v763 = vpop.permute.xlu0 %762
  %766 = vset.pattern.permute.xlu0 0
  %767 = vperm.xlu0 %766, %v746
  %v768 = vpop.permute.xlu0 %767
  %771 = vset.pattern.permute.xlu0 0
  %772 = vperm.xlu0 %771, %v747
  %v773 = vpop.permute.xlu0 %772
  %776 = vset.pattern.permute.xlu0 0
  %777 = vperm.xlu0 %776, %v748
  %v778 = vpop.permute.xlu0 %777
  %781 = vset.pattern.permute.xlu0 0
  %782 = vperm.xlu0 %781, %v749
  %v783 = vpop.permute.xlu0 %782
  %786 = vset.pattern.permute.xlu0 0
  %787 = vperm.xlu0 %786, %v750
  %v788 = vpop.permute.xlu0 %787
  %791 = vset.pattern.permute.xlu0 0
  %792 = vperm.xlu0 %791, %v751
  %v793 = vpop.permute.xlu0 %792
  %796 = vset.pattern.permute.xlu0 0
  %797 = vperm.xlu0 %796, %v752
  %v798 = vpop.permute.xlu0 %797
  %801 = vset.pattern.permute.xlu0 0
  %802 = vperm.xlu0 %801, %v753
  %v803 = vpop.permute.xlu0 %802
  %806 = vset.pattern.permute.xlu0 0
  %807 = vperm.xlu0 %806, %v754
  %v808 = vpop.permute.xlu0 %807
  %v821 = vunpack.c.l.b16 %v733
  %v822 = vunpack.c.l.b16 %v734
  %v823 = vunpack.c.l.b16 %v735
  %v824 = vunpack.c.l.b16 %v736
  %v825 = vunpack.c.l.b16 %v737
  %v826 = vunpack.c.l.b16 %v738
  %v827 = vunpack.c.l.b16 %v739
  %v828 = vunpack.c.l.b16 %v740
  %v829 = vunpack.c.l.b16 %v741
  %v830 = vunpack.c.l.b16 %v742
  %v831 = vunpack.c.l.b16 %v743
  %v832 = vpack.c.b16 %v822, %v821
  %v833 = vpack.c.b16 %v824, %v823
  %v834 = vpack.c.b16 %v826, %v825
  %v835 = vpack.c.b16 %v828, %v827
  %v836 = vpack.c.b16 %v830, %v829
  %v837 = vpack.c.b16 %v831, %v831
  %vm838 = vcmask 982016
  %v840 = vsel %vm838, %v832, 0
  %v843 = vsel %vm838, %v833, 0
  %v846 = vsel %vm838, %v834, 0
  %v849 = vsel %vm838, %v835, 0
  %v852 = vsel %vm838, %v836, 0
  %v855 = vsel %vm838, %v837, 0
  %vm857 = vcmask 1043456
  %v859 = vsel %vm857, %v732, 0
  %861 = vmatprep.subr.bf16.mxu0 0
  %862 = vmatpush1.bf16.msra.mxu0 %v725
  %863 = vmatprep.subr.bf16.mxu0 0
  %864 = vmatpush1.bf16.msra.mxu0 %v726
  %865 = vmatprep.subr.bf16.mxu0 0
  %866 = vmatpush1.bf16.msra.mxu0 %v727
  %867 = vmatprep.subr.bf16.mxu0 0
  %868 = vmatpush1.bf16.msra.mxu0 %v728
  %869 = vmatprep.subr.bf16.mxu0 0
  %870 = vmatpush1.bf16.msra.mxu0 %v729
  %871 = vmatprep.subr.bf16.mxu0 0
  %872 = vmatpush1.bf16.msra.mxu0 %v730
  %873 = vmatprep.subr.bf16.mxu0 0
  %874 = vmatpush1.bf16.msra.mxu0 %v731
  %875 = vmatprep.subr.bf16.mxu0 0
  %876 = vmatpush1.bf16.msra.mxu0 %v859
  %877 = vmatprep.subr.bf16.mxu0 0
  %878 = vmatpush1.bf16.msra.mxu0 0
  %879 = vmatprep.subr.bf16.mxu0 0
  %880 = vmatpush1.bf16.msra.mxu0 0
  %881 = vmatprep.subr.bf16.mxu0 0
  %882 = vmatpush1.bf16.msra.mxu0 0
  %883 = vmatprep.subr.bf16.mxu0 0
  %884 = vmatpush1.bf16.msra.mxu0 0
  %885 = vmatprep.subr.bf16.mxu0 0
  %886 = vmatpush1.bf16.msra.mxu0 0
  %887 = vmatprep.subr.bf16.mxu0 0
  %888 = vmatpush1.bf16.msra.mxu0 0
  %889 = vmatprep.subr.bf16.mxu0 0
  %890 = vmatpush1.bf16.msra.mxu0 0
  %891 = vmatprep.subr.bf16.mxu0 0
  %892 = vmatpush1.bf16.msra.mxu0 0
  %893 = vmatprep.mubr.bf16.mxu0 0
  %894 = vmatmul.mubr.bf16.gmra.mrb[0].mxu0 %v840
  %v895 = vpop.f32.mrb[0].mxu0
  %v896 = vadd.f32 %v758, %v895
  %v897 = vpop.f32.mrb[0].mxu0
  %v898 = vpop.f32.mrb[0].mxu0
  %v899 = vadd.f32 %v763, %v898
  %v900 = vpop.f32.mrb[0].mxu0
  %901 = vmatprep.mubr.bf16.mxu0 0
  %902 = vmatmul.mubr.bf16.gmra.mrb[0].mxu0 %v843
  %v903 = vpop.f32.mrb[0].mxu0
  %v904 = vadd.f32 %v768, %v903
  %v905 = vpop.f32.mrb[0].mxu0
  %v906 = vpop.f32.mrb[0].mxu0
  %v907 = vadd.f32 %v773, %v906
  %v908 = vpop.f32.mrb[0].mxu0
  %909 = vmatprep.mubr.bf16.mxu0 0
  %910 = vmatmul.mubr.bf16.gmra.mrb[0].mxu0 %v846
  %v911 = vpop.f32.mrb[0].mxu0
  %v912 = vadd.f32 %v778, %v911
  %v913 = vpop.f32.mrb[0].mxu0
  %v914 = vpop.f32.mrb[0].mxu0
  %v915 = vadd.f32 %v783, %v914
  %v916 = vpop.f32.mrb[0].mxu0
  %917 = vmatprep.mubr.bf16.mxu0 0
  %918 = vmatmul.mubr.bf16.gmra.mrb[0].mxu0 %v849
  %v919 = vpop.f32.mrb[0].mxu0
  %v920 = vadd.f32 %v788, %v919
  %v921 = vpop.f32.mrb[0].mxu0
  %v922 = vpop.f32.mrb[0].mxu0
  %v923 = vadd.f32 %v793, %v922
  %v924 = vpop.f32.mrb[0].mxu0
  %925 = vmatprep.mubr.bf16.mxu0 0
  %926 = vmatmul.mubr.bf16.gmra.mrb[0].mxu0 %v852
  %v927 = vpop.f32.mrb[0].mxu0
  %v928 = vadd.f32 %v798, %v927
  %v929 = vpop.f32.mrb[0].mxu0
  %v930 = vpop.f32.mrb[0].mxu0
  %v931 = vadd.f32 %v803, %v930
  %v932 = vpop.f32.mrb[0].mxu0
  %933 = vmatprep.mubr.bf16.mxu0 0
  %934 = vmatmul.mubr.bf16.gmra.mrb[0].mxu0 %v855
  %v935 = vpop.f32.mrb[0].mxu0
  %v936 = vadd.f32 %v808, %v935
  %v937 = vpop.f32.mrb[0].mxu0
  %v938 = vpop.f32.mrb[0].mxu0
  %v939 = vpop.f32.mrb[0].mxu0
  %940 = vdwg.mxu0
  %v941 = vmax.f32 %v896, 0.0
  %v942 = vmax.f32 %v899, 0.0
  %v943 = vmax.f32 %v904, 0.0
  %v944 = vmax.f32 %v907, 0.0
  %v945 = vmax.f32 %v912, 0.0
  %v946 = vmax.f32 %v915, 0.0
  %v947 = vmax.f32 %v920, 0.0
  %v948 = vmax.f32 %v923, 0.0
  %v949 = vmax.f32 %v928, 0.0
  %v950 = vmax.f32 %v931, 0.0
  %v951 = vmax.f32 %v936, 0.0
  %v952 = vpack.c.bf16 %v942, %v941
  %v953 = vpack.c.bf16 %v944, %v943
  %v954 = vpack.c.bf16 %v946, %v945
  %v955 = vpack.c.bf16 %v948, %v947
  %v956 = vpack.c.bf16 %v950, %v949
  %v957 = vpack.c.bf16 %v951, %v951
  %v958 = vld [vmem:[%s5] sm:$0xf]
  %v959 = vld [vmem:[%s5 + $0x4] sm:$0xf]
  %v960 = vld [vmem:[%s6] sm:$0xff]
  %v961 = vld [vmem:[%s6 + $0x8] sm:$0xff]
  %963 = vset.pattern.permute.xlu0 0
  %964 = vperm.xlu0 %963, %v960
  %v965 = vpop.permute.xlu0 %964
  %968 = vset.pattern.permute.xlu0 0
  %969 = vperm.xlu0 %968, %v961
  %v970 = vpop.permute.xlu0 %969
  %v974 = vunpack.c.l.b16 %v958
  %v975 = vunpack.c.l.b16 %v959
  %v976 = vpack.c.b16 %v975, %v974
  %vm977 = vcmask 687104
  %v979 = vsel %vm977, %v976, 0
  %vm981 = vcmask 1041408
  %v983 = vsel %vm981, %v957, 0
  %985 = vmatprep.subr.bf16.mxu0 0
  %986 = vmatpush1.bf16.msra.mxu0 %v952
  %987 = vmatprep.subr.bf16.mxu0 0
  %988 = vmatpush1.bf16.msra.mxu0 %v953
  %989 = vmatprep.subr.bf16.mxu0 0
  %990 = vmatpush1.bf16.msra.mxu0 %v954
  %991 = vmatprep.subr.bf16.mxu0 0
  %992 = vmatpush1.bf16.msra.mxu0 %v955
  %993 = vmatprep.subr.bf16.mxu0 0
  %994 = vmatpush1.bf16.msra.mxu0 %v956
  %995 = vmatprep.subr.bf16.mxu0 0
  %996 = vmatpush1.bf16.msra.mxu0 %v983
  %997 = vmatprep.subr.bf16.mxu0 0
  %998 = vmatpush1.bf16.msra.mxu0 0
  %999 = vmatprep.subr.bf16.mxu0 0
  %1000 = vmatpush1.bf16.msra.mxu0 0
  %1001 = vmatprep.subr.bf16.mxu0 0
  %1002 = vmatpush1.bf16.msra.mxu0 0
  %1003 = vmatprep.subr.bf16.mxu0 0
  %1004 = vmatpush1.bf16.msra.mxu0 0
  %1005 = vmatprep.subr.bf16.mxu0 0
  %1006 = vmatpush1.bf16.msra.mxu0 0
  %1007 = vmatprep.subr.bf16.mxu0 0
  %1008 = vmatpush1.bf16.msra.mxu0 0
  %1009 = vmatprep.subr.bf16.mxu0 0
  %1010 = vmatpush1.bf16.msra.mxu0 0
  %1011 = vmatprep.subr.bf16.mxu0 0
  %1012 = vmatpush1.bf16.msra.mxu0 0
  %1013 = vmatprep.subr.bf16.mxu0 0
  %1014 = vmatpush1.bf16.msra.mxu0 0
  %1015 = vmatprep.subr.bf16.mxu0 0
  %1016 = vmatpush1.bf16.msra.mxu0 0
  %1017 = vmatprep.mubr.bf16.mxu0 0
  %1018 = vmatmul.mubr.bf16.gmra.mrb[0].mxu0 %v979
  %v1019 = vpop.f32.mrb[0].mxu0
  %v1020 = vadd.f32 %v965, %v1019
  %v1021 = vpop.f32.mrb[0].mxu0
  %v1022 = vpop.f32.mrb[0].mxu0
  %v1023 = vadd.f32 %v970, %v1022
  %v1024 = vpop.f32.mrb[0].mxu0
  %1025 = vdwg.mxu0
  %vm1026 = vcmask 15360
  %1027 = vst.msk [vmem:[%s7] sm:$0xff] %vm1026, %v1020
  %1028 = vst.msk [vmem:[%s7 + $0x8] sm:$0xff] %vm1026, %v1023
  // Predicated region
  $region30: #{lenet5_forward.5} parent=0 // pred_check
    _
  $region31: #{lenet5_forward.5} parent=0 // pred_check_branch
    %1030 = sbr.rel (0) target = $region33
  $region32: #{lenet5_forward.5} parent=0 // pred_region
    _
  $region33: #{lenet5_forward.5} parent=0 // pred_fallthru
    _
  // Predicated region
  $region34: #{lenet5_forward.5} parent=0 // pred_check
    _
  $region35: #{lenet5_forward.5} parent=0 // pred_check_branch
    %1032 = sbr.rel (0) target = $region37
  $region36: #{lenet5_forward.5} parent=0 // pred_region
    _
  $region37: #{lenet5_forward.5} parent=0 // pred_fallthru
    _

</llo_original>
